<compile_context>
chip_gen: v6e
topology: v6e:2x2x1
jax: 0.10.0
libtpu: 0.0.40
codegen_flags: <defaults>
</compile_context>

<pallas_src>
import functools

import jax
import jax.numpy as jnp
import numpy as np
from jax.experimental import pallas as pl
from jax.experimental.pallas import tpu as pltpu

NUM_HEADS = 8
APPROX_RECIP = True   # EUP vrcp (rel err ~1e-4); set False for exact-divide parity


# ----------------------------------------------------------------------------
# elementwise helpers (single EUP push each)
# ----------------------------------------------------------------------------
def _sigmoid(x):
    # sigmoid(x) == 0.5 * (1 + tanh(x/2)): one EUP op instead of exp + reciprocal.
    return 0.5 * (1.0 + jnp.tanh(0.5 * x))


def _gelu(x):
    # tanh-approximate GELU (== torch.nn.GELU(approximate='tanh')), ~3e-4 abs err.
    # TODO(synk): switch to exact-erf GELU if bit-tight parity with torch.nn.GELU()
    # (default erf form) is required.
    c = 0.7978845608028654  # sqrt(2/pi)
    return 0.5 * x * (1.0 + jnp.tanh(c * (x + 0.044715 * x * x * x)))


# ----------------------------------------------------------------------------
# kernel: MHA + gate MLP + LSTM cell (zero initial state) + awareness head
# ----------------------------------------------------------------------------
def _meta_kernel(x_ref, w_ref, b_ref, cl_ref, ho_ref, *, A, B, D, H):
    dh = D // H
    scale = float(dh) ** -0.5
    AB = A * B
    W = w_ref.shape[1]                 # lane-padded slab width (128 for D=32)

    # ---- packed parameter blocks: full-W (lane-dense) loads, results sliced ----
    w_qkv   = w_ref[pl.ds(0 * D, D), :]        # (D, W)  [q | k | v] in cols 0:3D
    w_o     = w_ref[pl.ds(1 * D, D), :]        # (D, W)  cols 0:D
    w_g1    = w_ref[pl.ds(2 * D, D), :]        # (D, W)  cols 0:2D
    w_g2    = w_ref[pl.ds(3 * D, 2 * D), :]    # (2D, W) cols 0:D
    w_l     = w_ref[pl.ds(5 * D, D), :]        # (D, W)  [i | g | o] in cols 0:3D
    w_a1_h  = w_ref[pl.ds(6 * D, D), :]        # (D, W)  acts on h_t
    w_a1_g  = w_ref[pl.ds(7 * D, D), :]        # (D, W)  acts on gm
    w_a2    = w_ref[pl.ds(8 * D, D), :]        # (D, W)  3 cols relocated to D:D+3
    hmask   = w_ref[pl.ds(9 * D, D), :]        # (D, W)  head block indicator (cols 0:H)
    hmask_t = w_ref[pl.ds(10 * D, W), :]       # (W, W)  head -> feature expander
    eye_d   = w_ref[pl.ds(10 * D + W, D), :]   # (D, W)  identity (widens h_t to W lanes)

    b_qkv   = b_ref[pl.ds(0, 1), :]
    b_o     = b_ref[pl.ds(1, 1), :]
    b_g1    = b_ref[pl.ds(2, 1), :]
    b_g2    = b_ref[pl.ds(3, 1), :]
    b_l     = b_ref[pl.ds(4, 1), :]
    b_a1    = b_ref[pl.ds(5, 1), :]
    b_a2    = b_ref[pl.ds(6, 1), :]            # values at lanes D:D+3
    aw_mask = b_ref[pl.ds(7, 1), :]            # 0 at lanes D:D+3, -1e30 elsewhere

    x2 = x_ref[...]                            # (AB, D), token-major (flattened by wrapper)

    # --- multi-head self attention: single fused QKV matmul (full-lane) -------
    qkv = jnp.dot(x2, w_qkv, preferred_element_type=jnp.float32) + b_qkv   # (AB, W)
    q = qkv[:, 0:D] * scale
    k = qkv[:, D:2 * D]
    v = qkv[:, 2 * D:3 * D]

    # leading-dim-only reshapes (layout preserving); keys live on axis 1
    q4 = q.reshape(A, 1, B, D)
    k4 = k.reshape(1, A, B, D)
    v4 = v.reshape(1, A, B, D)

    # per-head scores via block-indicator matmul; the RHS is full-W so the
    # softmax below runs on dense (B, W) vregs (extra lanes are zero / harmless).
    # TODO(synk): for non-toy L, replace the (A, A, B, *) intermediates with a
    # flash-style key-axis grid + online-softmax accumulator (they are quadratic
    # in L and would be the v7x 64-MiB-VMEM risk), and add a 'parallel' grid
    # axis so the second TensorCore is used.
    t = (q4 * k4).reshape(A * A * B, D)
    scores = jnp.dot(t, hmask, preferred_element_type=jnp.float32)          # (AAB, W)
    scores = scores.reshape(A, A, B, W)

    m = jnp.max(scores, axis=1, keepdims=True)
    e = jnp.exp(scores - m)
    attn = e * pl.reciprocal(jnp.sum(e, axis=1, keepdims=True), approx=APPROX_RECIP)

    # expand head weights back to the feature axis (zero rows kill padding lanes)
    attn_d = jnp.dot(attn.reshape(A * A * B, W), hmask_t,
                     preferred_element_type=jnp.float32)                    # (AAB, W)
    wv = attn_d[:, 0:D].reshape(A, A, B, D) * v4
    ctx = jnp.sum(wv, axis=1).reshape(AB, D)                                # (AB, D)

    attn_out = jnp.dot(ctx, w_o, preferred_element_type=jnp.float32) + b_o  # (AB, W), pads 0

    # --- consciousness gate: Linear -> GELU -> Linear -> Sigmoid --------------
    g1 = _gelu(jnp.dot(attn_out[:, 0:D], w_g1,
                       preferred_element_type=jnp.float32) + b_g1)          # (AB, W), pads 0
    g2 = jnp.dot(g1[:, 0:2 * D], w_g2, preferred_element_type=jnp.float32) + b_g2
    cl_full = _sigmoid(g2)                    # (AB, W); lanes >= D hold sigmoid(0)=0.5 filler
    cl_ref[...] = cl_full                     # full-width, unmasked store; wrapper slices 0:D
    cl2 = cl_full[:, 0:D]

    # --- gated features, mean over the batch axis ------------------------------
    gm = jnp.sum((x2 * cl2).reshape(A, B, D), axis=1) * (1.0 / B)           # (A, D)

    # --- LSTMCell with zero initial (h, c): fused i|g|o gates ------------------
    # TODO(synk): forget gate and W_hh are dropped; only valid because h0=c0=0.
    gates = jnp.dot(gm, w_l, preferred_element_type=jnp.float32) + b_l      # (A, W)
    gi = _sigmoid(gates[:, 0:D])
    gg = jnp.tanh(gates[:, D:2 * D])
    go = _sigmoid(gates[:, 2 * D:3 * D])
    h_t = go * jnp.tanh(gi * gg)                                            # (A, D)

    # --- awareness predictor on cat([h_t, gm]) (split matmul == concat) --------
    a1 = _gelu(jnp.dot(h_t, w_a1_h, preferred_element_type=jnp.float32)
               + jnp.dot(gm, w_a1_g, preferred_element_type=jnp.float32)
               + b_a1)                                                      # (A, W), pads 0
    logits = (jnp.dot(a1[:, 0:D], w_a2, preferred_element_type=jnp.float32)
              + b_a2 + aw_mask)               # valid logits at lanes D:D+3, -1e30 elsewhere
    lmax = jnp.max(logits, axis=-1, keepdims=True)
    le = jnp.exp(logits - lmax)
    aw = le * pl.reciprocal(jnp.sum(le, axis=-1, keepdims=True),
                            approx=APPROX_RECIP)   # softmax at D:D+3, exactly 0 elsewhere

    # pack [h_t | awareness softmax | 0] into one lane-dense (A, W) store
    h_wide = jnp.dot(h_t, eye_d, preferred_element_type=jnp.float32)        # h_t in lanes 0:D
    ho_ref[...] = h_wide + aw


# ----------------------------------------------------------------------------
# parameter construction (deterministic, PyTorch-shaped) and wrapper
# ----------------------------------------------------------------------------
def init_params(key, D):
    ks = jax.random.split(key, 16)

    def u(k, shape, fan_in):
        b = 1.0 / (fan_in ** 0.5)
        return jax.random.uniform(k, shape, jnp.float32, -b, b)

    return {
        'in_proj_w':  u(ks[0],  (3 * D, D), D),
        'in_proj_b':  u(ks[1],  (3 * D,),   D),
        'out_proj_w': u(ks[2],  (D, D),     D),
        'out_proj_b': u(ks[3],  (D,),       D),
        'gate_w1':    u(ks[4],  (2 * D, D), D),
        'gate_b1':    u(ks[5],  (2 * D,),   D),
        'gate_w2':    u(ks[6],  (D, 2 * D), 2 * D),
        'gate_b2':    u(ks[7],  (D,),       2 * D),
        'lstm_w_ih':  u(ks[8],  (4 * D, D), D),
        'lstm_b_ih':  u(ks[9],  (4 * D,),   D),
        'lstm_w_hh':  u(ks[10], (4 * D, D), D),  # unused: initial h == 0
        'lstm_b_hh':  u(ks[11], (4 * D,),   D),
        'aw_w1':      u(ks[12], (D, 2 * D), 2 * D),
        'aw_b1':      u(ks[13], (D,),       2 * D),
        'aw_w2':      u(ks[14], (3, D),     D),
        'aw_b2':      u(ks[15], (3,),       D),
    }


def meta_consciousness_forward(x, params):
    L, N, D = x.shape
    H = NUM_HEADS
    dh = D // H
    assert D % H == 0 and D % 8 == 0
    padw = ((3 * D + 127) // 128) * 128       # lane-pad every packed row block
    assert D + 3 <= padw
    f32 = jnp.float32

    def pad_w(w):
        return jnp.pad(w.astype(f32), ((0, 0), (0, padw - w.shape[1])))

    def pad_b(b):
        return jnp.pad(b.astype(f32), (0, padw - b.shape[0]))[None, :]

    # --- (in, out)-layout weights; QKV and LSTM i|g|o fusions ------------------
    w_qkv = params['in_proj_w'].T                                    # (D, 3D)
    w_o   = params['out_proj_w'].T                                   # (D, D)
    w_g1  = params['gate_w1'].T                                      # (D, 2D)
    w_g2  = params['gate_w2'].T                                      # (2D, D)
    wih   = params['lstm_w_ih']                                      # gate order (i, f, g, o)
    w_l   = jnp.concatenate([wih[0:D].T, wih[2 * D:3 * D].T, wih[3 * D:4 * D].T],
                            axis=1)                                  # (D, 3D): i|g|o
    w_a1  = params['aw_w1'].T                                        # (2D, D): [h_t ; gm]
    # awareness logits relocated to lanes D:D+3 so the packed [h | aw] output
    # needs no in-kernel lane shift.
    w_a2  = jnp.zeros((D, padw), f32).at[:, D:D + 3].set(params['aw_w2'].T)

    # compile-time head-indicator / expander / widener constants, packed into the slab
    d_idx = np.arange(D)
    hm  = np.zeros((D, padw), np.float32);    hm[d_idx, d_idx // dh] = 1.0
    hmt = np.zeros((padw, padw), np.float32); hmt[d_idx // dh, d_idx] = 1.0
    eye = np.zeros((D, padw), np.float32);    eye[d_idx, d_idx] = 1.0

    # single packed weight slab (one DMA descriptor), (11D + padw) x padw
    wpack = jnp.concatenate(
        [pad_w(w_qkv), pad_w(w_o), pad_w(w_g1), pad_w(w_g2), pad_w(w_l),
         pad_w(w_a1[0:D]), pad_w(w_a1[D:2 * D]), w_a2,
         jnp.asarray(hm), jnp.asarray(hmt), jnp.asarray(eye)], axis=0)

    bl  = params['lstm_b_ih'] + params['lstm_b_hh']
    b_l = jnp.concatenate([bl[0:D], bl[2 * D:3 * D], bl[3 * D:4 * D]])
    b_a2_row = jnp.zeros((padw,), f32).at[D:D + 3].set(params['aw_b2'])[None, :]
    aw_mask  = jnp.full((padw,), -1e30, f32).at[D:D + 3].set(0.0)[None, :]
    # single packed bias slab: 8 rows (one sublane tile) x padw lanes
    bpack = jnp.concatenate([
        pad_b(params['in_proj_b']), pad_b(params['out_proj_b']),
        pad_b(params['gate_b1']), pad_b(params['gate_b2']),
        pad_b(b_l), pad_b(params['aw_b1']),
        b_a2_row, aw_mask], axis=0)

    # token-major flatten done outside the kernel (free XLA reshape)
    x2 = x.reshape(L * N, D).astype(f32)

    vm = pl.BlockSpec(memory_space=pltpu.MemorySpace.VMEM)
    out_shape = (
        jax.ShapeDtypeStruct((L * N, padw), f32),   # emergence slab (lanes 0:D valid)
        jax.ShapeDtypeStruct((L, padw), f32),       # [h_t | awareness | 0] packed slab
    )

    # TODO(synk): to amortize the fixed call / serial-chain cost (and light up
    # v7x's second TensorCore), batch many independent forwards through one
    # pallas_call with a leading 'parallel' grid axis; a single (2, 8, 32)
    # forward has no parallelism worth splitting.
    cl_pad, ho = pl.pallas_call(
        functools.partial(_meta_kernel, A=L, B=N, D=D, H=H),
        out_shape=out_shape,
        in_specs=[vm, vm, vm],
        out_specs=(vm, vm),
        compiler_params=pltpu.CompilerParams(
            vmem_limit_bytes=48 * 1024 * 1024),
    )(x2, wpack, bpack)

    cl = cl_pad[:, 0:D].reshape(L, N, D)
    return {
        'emergence_patterns': cl,
        'meta_awareness': ho[:, D:D + 3],
        'memory_state': ho[:, 0:D],
        # scalar mean of an already-produced output: computed outside the kernel
        'consciousness_level': jnp.mean(cl),
    }


if __name__ == "__main__":
    key = jax.random.PRNGKey(0)
    kx, kp = jax.random.split(key)

    L, N, D = 2, 8, 32                 # x: (seq, batch, embed) per MHA default
    x = jax.random.normal(kx, (L, N, D), jnp.float32)
    params = init_params(kp, D)

    out = jax.block_until_ready(meta_consciousness_forward(x, params))

    assert out['emergence_patterns'].shape == (L, N, D)
    assert out['meta_awareness'].shape == (L, 3)
    assert out['memory_state'].shape == (L, D)
    assert out['consciousness_level'].shape == ()
    for leaf in jax.tree_util.tree_leaves(out):
        assert bool(jnp.all(jnp.isfinite(leaf)))
    row_sums = jnp.sum(out['meta_awareness'], axis=-1)
    assert bool(jnp.all(jnp.abs(row_sums - 1.0) < 5e-2))
    print("KERNEL_OK")
</pallas_src>

<mosaic_0001>
module attributes {stable_mosaic.version = 11 : i64} {
  func.func @_meta_kernel(%arg0: memref<16x32xf32, #tpu.memory_space<vmem>>, %arg1: memref<480x128xf32, #tpu.memory_space<vmem>>, %arg2: memref<8x128xf32, #tpu.memory_space<vmem>>, %arg3: memref<16x128xf32, #tpu.memory_space<vmem>>, %arg4: memref<2x128xf32, #tpu.memory_space<vmem>>) attributes {dimension_semantics = [], scalar_prefetch = 0 : i64, scratch_operands = 0 : i64, tpu.core_type = #tpu.core_type<tc>} {
    %c0 = arith.constant 0 : index
    %c0_0 = arith.constant 0 : index
    %0 = vector.load %arg1[%c0, %c0_0] : memref<480x128xf32, #tpu.memory_space<vmem>>, vector<32x128xf32>
    %c32 = arith.constant 32 : index
    %c0_1 = arith.constant 0 : index
    %1 = vector.load %arg1[%c32, %c0_1] : memref<480x128xf32, #tpu.memory_space<vmem>>, vector<32x128xf32>
    %c64 = arith.constant 64 : index
    %c0_2 = arith.constant 0 : index
    %2 = vector.load %arg1[%c64, %c0_2] : memref<480x128xf32, #tpu.memory_space<vmem>>, vector<32x128xf32>
    %c96 = arith.constant 96 : index
    %c0_3 = arith.constant 0 : index
    %3 = vector.load %arg1[%c96, %c0_3] : memref<480x128xf32, #tpu.memory_space<vmem>>, vector<64x128xf32>
    %c160 = arith.constant 160 : index
    %c0_4 = arith.constant 0 : index
    %4 = vector.load %arg1[%c160, %c0_4] : memref<480x128xf32, #tpu.memory_space<vmem>>, vector<32x128xf32>
    %c192 = arith.constant 192 : index
    %c0_5 = arith.constant 0 : index
    %5 = vector.load %arg1[%c192, %c0_5] : memref<480x128xf32, #tpu.memory_space<vmem>>, vector<32x128xf32>
    %c224 = arith.constant 224 : index
    %c0_6 = arith.constant 0 : index
    %6 = vector.load %arg1[%c224, %c0_6] : memref<480x128xf32, #tpu.memory_space<vmem>>, vector<32x128xf32>
    %c256 = arith.constant 256 : index
    %c0_7 = arith.constant 0 : index
    %7 = vector.load %arg1[%c256, %c0_7] : memref<480x128xf32, #tpu.memory_space<vmem>>, vector<32x128xf32>
    %c288 = arith.constant 288 : index
    %c0_8 = arith.constant 0 : index
    %8 = vector.load %arg1[%c288, %c0_8] : memref<480x128xf32, #tpu.memory_space<vmem>>, vector<32x128xf32>
    %c320 = arith.constant 320 : index
    %c0_9 = arith.constant 0 : index
    %9 = vector.load %arg1[%c320, %c0_9] : memref<480x128xf32, #tpu.memory_space<vmem>>, vector<128x128xf32>
    %c448 = arith.constant 448 : index
    %c0_10 = arith.constant 0 : index
    %10 = vector.load %arg1[%c448, %c0_10] : memref<480x128xf32, #tpu.memory_space<vmem>>, vector<32x128xf32>
    %c0_11 = arith.constant 0 : index
    %c0_12 = arith.constant 0 : index
    %11 = vector.load %arg2[%c0_11, %c0_12] : memref<8x128xf32, #tpu.memory_space<vmem>>, vector<1x128xf32>
    %c1 = arith.constant 1 : index
    %c0_13 = arith.constant 0 : index
    %12 = vector.load %arg2[%c1, %c0_13] : memref<8x128xf32, #tpu.memory_space<vmem>>, vector<1x128xf32>
    %c2 = arith.constant 2 : index
    %c0_14 = arith.constant 0 : index
    %13 = vector.load %arg2[%c2, %c0_14] : memref<8x128xf32, #tpu.memory_space<vmem>>, vector<1x128xf32>
    %c3 = arith.constant 3 : index
    %c0_15 = arith.constant 0 : index
    %14 = vector.load %arg2[%c3, %c0_15] : memref<8x128xf32, #tpu.memory_space<vmem>>, vector<1x128xf32>
    %c4 = arith.constant 4 : index
    %c0_16 = arith.constant 0 : index
    %15 = vector.load %arg2[%c4, %c0_16] : memref<8x128xf32, #tpu.memory_space<vmem>>, vector<1x128xf32>
    %c5 = arith.constant 5 : index
    %c0_17 = arith.constant 0 : index
    %16 = vector.load %arg2[%c5, %c0_17] : memref<8x128xf32, #tpu.memory_space<vmem>>, vector<1x128xf32>
    %c6 = arith.constant 6 : index
    %c0_18 = arith.constant 0 : index
    %17 = vector.load %arg2[%c6, %c0_18] : memref<8x128xf32, #tpu.memory_space<vmem>>, vector<1x128xf32>
    %c7 = arith.constant 7 : index
    %c0_19 = arith.constant 0 : index
    %18 = vector.load %arg2[%c7, %c0_19] : memref<8x128xf32, #tpu.memory_space<vmem>>, vector<1x128xf32>
    %c0_20 = arith.constant 0 : index
    %c0_21 = arith.constant 0 : index
    %19 = vector.load %arg0[%c0_20, %c0_21] : memref<16x32xf32, #tpu.memory_space<vmem>>, vector<16x32xf32>
    %cst = arith.constant dense<0.000000e+00> : vector<16x128xf32>
    %20 = tpu.matmul %19, %0, %cst {dimension_numbers = #tpu.dot_dimension_numbers<[1], [0], [0], [1], [0, 0, 1, 1], [], []>} : vector<16x32xf32>, vector<32x128xf32>, vector<16x128xf32> -> vector<16x128xf32>
    %21 = vector.broadcast %11 : vector<1x128xf32> to vector<16x128xf32>
    %22 = arith.addf %20, %21 : vector<16x128xf32>
    %23 = vector.extract_strided_slice %22 {offsets = [0, 0], sizes = [16, 32], strides = [1, 1]} : vector<16x128xf32> to vector<16x32xf32>
    %cst_22 = arith.constant 5.000000e-01 : f32
    %24 = vector.broadcast %cst_22 : f32 to vector<16x32xf32>
    %25 = arith.mulf %23, %24 : vector<16x32xf32>
    %26 = vector.extract_strided_slice %22 {offsets = [0, 32], sizes = [16, 32], strides = [1, 1]} : vector<16x128xf32> to vector<16x32xf32>
    %27 = vector.extract_strided_slice %22 {offsets = [0, 64], sizes = [16, 32], strides = [1, 1]} : vector<16x128xf32> to vector<16x32xf32>
    %28 = vector.shape_cast %25 : vector<16x32xf32> to vector<2x1x8x32xf32>
    %29 = vector.shape_cast %26 : vector<16x32xf32> to vector<1x2x8x32xf32>
    %30 = vector.shape_cast %27 : vector<16x32xf32> to vector<1x2x8x32xf32>
    %31 = vector.broadcast %28 : vector<2x1x8x32xf32> to vector<2x2x8x32xf32>
    %32 = vector.broadcast %29 : vector<1x2x8x32xf32> to vector<2x2x8x32xf32>
    %33 = arith.mulf %31, %32 : vector<2x2x8x32xf32>
    %34 = vector.shape_cast %33 : vector<2x2x8x32xf32> to vector<32x32xf32>
    %cst_23 = arith.constant dense<0.000000e+00> : vector<32x128xf32>
    %35 = tpu.matmul %34, %8, %cst_23 {dimension_numbers = #tpu.dot_dimension_numbers<[1], [0], [0], [1], [0, 0, 1, 1], [], []>} : vector<32x32xf32>, vector<32x128xf32>, vector<32x128xf32> -> vector<32x128xf32>
    %36 = vector.shape_cast %35 : vector<32x128xf32> to vector<2x2x8x128xf32>
    %cst_24 = arith.constant dense<0xFF800000> : vector<2x8x128xf32>
    %37 = vector.multi_reduction <maximumf>, %36, %cst_24 [1] : vector<2x2x8x128xf32> to vector<2x8x128xf32>
    %38 = vector.shape_cast %37 : vector<2x8x128xf32> to vector<2x1x8x128xf32>
    %39 = vector.broadcast %38 : vector<2x1x8x128xf32> to vector<2x2x8x128xf32>
    %40 = arith.subf %36, %39 : vector<2x2x8x128xf32>
    %41 = math.exp %40 : vector<2x2x8x128xf32>
    %cst_25 = arith.constant dense<0.000000e+00> : vector<2x8x128xf32>
    %42 = vector.multi_reduction <add>, %41, %cst_25 [1] : vector<2x2x8x128xf32> to vector<2x8x128xf32>
    %43 = vector.shape_cast %42 : vector<2x8x128xf32> to vector<2x1x8x128xf32>
    %44 = tpu.reciprocal %43 {approx = true} : vector<2x1x8x128xf32> -> vector<2x1x8x128xf32>
    %45 = vector.broadcast %44 : vector<2x1x8x128xf32> to vector<2x2x8x128xf32>
    %46 = arith.mulf %41, %45 : vector<2x2x8x128xf32>
    %47 = vector.shape_cast %46 : vector<2x2x8x128xf32> to vector<32x128xf32>
    %cst_26 = arith.constant dense<0.000000e+00> : vector<32x128xf32>
    %48 = tpu.matmul %47, %9, %cst_26 {dimension_numbers = #tpu.dot_dimension_numbers<[1], [0], [0], [1], [0, 0, 1, 1], [], []>} : vector<32x128xf32>, vector<128x128xf32>, vector<32x128xf32> -> vector<32x128xf32>
    %49 = vector.extract_strided_slice %48 {offsets = [0, 0], sizes = [32, 32], strides = [1, 1]} : vector<32x128xf32> to vector<32x32xf32>
    %50 = vector.shape_cast %49 : vector<32x32xf32> to vector<2x2x8x32xf32>
    %51 = vector.broadcast %30 : vector<1x2x8x32xf32> to vector<2x2x8x32xf32>
    %52 = arith.mulf %50, %51 : vector<2x2x8x32xf32>
    %cst_27 = arith.constant dense<0.000000e+00> : vector<2x8x32xf32>
    %53 = vector.multi_reduction <add>, %52, %cst_27 [1] : vector<2x2x8x32xf32> to vector<2x8x32xf32>
    %54 = vector.shape_cast %53 : vector<2x8x32xf32> to vector<16x32xf32>
    %cst_28 = arith.constant dense<0.000000e+00> : vector<16x128xf32>
    %55 = tpu.matmul %54, %1, %cst_28 {dimension_numbers = #tpu.dot_dimension_numbers<[1], [0], [0], [1], [0, 0, 1, 1], [], []>} : vector<16x32xf32>, vector<32x128xf32>, vector<16x128xf32> -> vector<16x128xf32>
    %56 = vector.broadcast %12 : vector<1x128xf32> to vector<16x128xf32>
    %57 = arith.addf %55, %56 : vector<16x128xf32>
    %58 = vector.extract_strided_slice %57 {offsets = [0, 0], sizes = [16, 32], strides = [1, 1]} : vector<16x128xf32> to vector<16x32xf32>
    %cst_29 = arith.constant dense<0.000000e+00> : vector<16x128xf32>
    %59 = tpu.matmul %58, %2, %cst_29 {dimension_numbers = #tpu.dot_dimension_numbers<[1], [0], [0], [1], [0, 0, 1, 1], [], []>} : vector<16x32xf32>, vector<32x128xf32>, vector<16x128xf32> -> vector<16x128xf32>
    %60 = vector.broadcast %13 : vector<1x128xf32> to vector<16x128xf32>
    %61 = arith.addf %59, %60 : vector<16x128xf32>
    %cst_30 = arith.constant 5.000000e-01 : f32
    %62 = vector.broadcast %cst_30 : f32 to vector<16x128xf32>
    %63 = arith.mulf %62, %61 : vector<16x128xf32>
    %cst_31 = arith.constant 4.471500e-02 : f32
    %64 = vector.broadcast %cst_31 : f32 to vector<16x128xf32>
    %65 = arith.mulf %64, %61 : vector<16x128xf32>
    %66 = arith.mulf %65, %61 : vector<16x128xf32>
    %67 = arith.mulf %66, %61 : vector<16x128xf32>
    %68 = arith.addf %61, %67 : vector<16x128xf32>
    %cst_32 = arith.constant 0.797884583 : f32
    %69 = vector.broadcast %cst_32 : f32 to vector<16x128xf32>
    %70 = arith.mulf %69, %68 : vector<16x128xf32>
    %71 = math.tanh %70 : vector<16x128xf32>
    %cst_33 = arith.constant 1.000000e+00 : f32
    %72 = vector.broadcast %cst_33 : f32 to vector<16x128xf32>
    %73 = arith.addf %72, %71 : vector<16x128xf32>
    %74 = arith.mulf %63, %73 : vector<16x128xf32>
    %75 = vector.extract_strided_slice %74 {offsets = [0, 0], sizes = [16, 64], strides = [1, 1]} : vector<16x128xf32> to vector<16x64xf32>
    %cst_34 = arith.constant dense<0.000000e+00> : vector<16x128xf32>
    %76 = tpu.matmul %75, %3, %cst_34 {dimension_numbers = #tpu.dot_dimension_numbers<[1], [0], [0], [1], [0, 0, 1, 1], [], []>} : vector<16x64xf32>, vector<64x128xf32>, vector<16x128xf32> -> vector<16x128xf32>
    %77 = vector.broadcast %14 : vector<1x128xf32> to vector<16x128xf32>
    %78 = arith.addf %76, %77 : vector<16x128xf32>
    %cst_35 = arith.constant 5.000000e-01 : f32
    %79 = vector.broadcast %cst_35 : f32 to vector<16x128xf32>
    %80 = arith.mulf %79, %78 : vector<16x128xf32>
    %81 = math.tanh %80 : vector<16x128xf32>
    %cst_36 = arith.constant 1.000000e+00 : f32
    %82 = vector.broadcast %cst_36 : f32 to vector<16x128xf32>
    %83 = arith.addf %82, %81 : vector<16x128xf32>
    %cst_37 = arith.constant 5.000000e-01 : f32
    %84 = vector.broadcast %cst_37 : f32 to vector<16x128xf32>
    %85 = arith.mulf %84, %83 : vector<16x128xf32>
    %c0_38 = arith.constant 0 : index
    %c0_39 = arith.constant 0 : index
    %86 = vector.load %arg3[%c0_38, %c0_39] : memref<16x128xf32, #tpu.memory_space<vmem>>, vector<16x128xf32>
    tpu.vector_store %arg3[%c0_38, %c0_39], %85 {strides = array<i32>} : memref<16x128xf32, #tpu.memory_space<vmem>>, vector<16x128xf32>,
    %87 = vector.extract_strided_slice %85 {offsets = [0, 0], sizes = [16, 32], strides = [1, 1]} : vector<16x128xf32> to vector<16x32xf32>
    %88 = arith.mulf %19, %87 : vector<16x32xf32>
    %89 = vector.shape_cast %88 : vector<16x32xf32> to vector<2x8x32xf32>
    %cst_40 = arith.constant dense<0.000000e+00> : vector<2x32xf32>
    %90 = vector.multi_reduction <add>, %89, %cst_40 [1] : vector<2x8x32xf32> to vector<2x32xf32>
    %cst_41 = arith.constant 1.250000e-01 : f32
    %91 = vector.broadcast %cst_41 : f32 to vector<2x32xf32>
    %92 = arith.mulf %90, %91 : vector<2x32xf32>
    %cst_42 = arith.constant dense<0.000000e+00> : vector<2x128xf32>
    %93 = tpu.matmul %92, %4, %cst_42 {dimension_numbers = #tpu.dot_dimension_numbers<[1], [0], [0], [1], [0, 0, 1, 1], [], []>} : vector<2x32xf32>, vector<32x128xf32>, vector<2x128xf32> -> vector<2x128xf32>
    %94 = vector.broadcast %15 : vector<1x128xf32> to vector<2x128xf32>
    %95 = arith.addf %93, %94 : vector<2x128xf32>
    %96 = vector.extract_strided_slice %95 {offsets = [0, 0], sizes = [2, 32], strides = [1, 1]} : vector<2x128xf32> to vector<2x32xf32>
    %cst_43 = arith.constant 5.000000e-01 : f32
    %97 = vector.broadcast %cst_43 : f32 to vector<2x32xf32>
    %98 = arith.mulf %97, %96 : vector<2x32xf32>
    %99 = math.tanh %98 : vector<2x32xf32>
    %cst_44 = arith.constant 1.000000e+00 : f32
    %100 = vector.broadcast %cst_44 : f32 to vector<2x32xf32>
    %101 = arith.addf %100, %99 : vector<2x32xf32>
    %cst_45 = arith.constant 5.000000e-01 : f32
    %102 = vector.broadcast %cst_45 : f32 to vector<2x32xf32>
    %103 = arith.mulf %102, %101 : vector<2x32xf32>
    %104 = vector.extract_strided_slice %95 {offsets = [0, 32], sizes = [2, 32], strides = [1, 1]} : vector<2x128xf32> to vector<2x32xf32>
    %105 = math.tanh %104 : vector<2x32xf32>
    %106 = vector.extract_strided_slice %95 {offsets = [0, 64], sizes = [2, 32], strides = [1, 1]} : vector<2x128xf32> to vector<2x32xf32>
    %cst_46 = arith.constant 5.000000e-01 : f32
    %107 = vector.broadcast %cst_46 : f32 to vector<2x32xf32>
    %108 = arith.mulf %107, %106 : vector<2x32xf32>
    %109 = math.tanh %108 : vector<2x32xf32>
    %cst_47 = arith.constant 1.000000e+00 : f32
    %110 = vector.broadcast %cst_47 : f32 to vector<2x32xf32>
    %111 = arith.addf %110, %109 : vector<2x32xf32>
    %cst_48 = arith.constant 5.000000e-01 : f32
    %112 = vector.broadcast %cst_48 : f32 to vector<2x32xf32>
    %113 = arith.mulf %112, %111 : vector<2x32xf32>
    %114 = arith.mulf %103, %105 : vector<2x32xf32>
    %115 = math.tanh %114 : vector<2x32xf32>
    %116 = arith.mulf %113, %115 : vector<2x32xf32>
    %cst_49 = arith.constant dense<0.000000e+00> : vector<2x128xf32>
    %117 = tpu.matmul %116, %5, %cst_49 {dimension_numbers = #tpu.dot_dimension_numbers<[1], [0], [0], [1], [0, 0, 1, 1], [], []>} : vector<2x32xf32>, vector<32x128xf32>, vector<2x128xf32> -> vector<2x128xf32>
    %cst_50 = arith.constant dense<0.000000e+00> : vector<2x128xf32>
    %118 = tpu.matmul %92, %6, %cst_50 {dimension_numbers = #tpu.dot_dimension_numbers<[1], [0], [0], [1], [0, 0, 1, 1], [], []>} : vector<2x32xf32>, vector<32x128xf32>, vector<2x128xf32> -> vector<2x128xf32>
    %119 = arith.addf %117, %118 : vector<2x128xf32>
    %120 = vector.broadcast %16 : vector<1x128xf32> to vector<2x128xf32>
    %121 = arith.addf %119, %120 : vector<2x128xf32>
    %cst_51 = arith.constant 5.000000e-01 : f32
    %122 = vector.broadcast %cst_51 : f32 to vector<2x128xf32>
    %123 = arith.mulf %122, %121 : vector<2x128xf32>
    %cst_52 = arith.constant 4.471500e-02 : f32
    %124 = vector.broadcast %cst_52 : f32 to vector<2x128xf32>
    %125 = arith.mulf %124, %121 : vector<2x128xf32>
    %126 = arith.mulf %125, %121 : vector<2x128xf32>
    %127 = arith.mulf %126, %121 : vector<2x128xf32>
    %128 = arith.addf %121, %127 : vector<2x128xf32>
    %cst_53 = arith.constant 0.797884583 : f32
    %129 = vector.broadcast %cst_53 : f32 to vector<2x128xf32>
    %130 = arith.mulf %129, %128 : vector<2x128xf32>
    %131 = math.tanh %130 : vector<2x128xf32>
    %cst_54 = arith.constant 1.000000e+00 : f32
    %132 = vector.broadcast %cst_54 : f32 to vector<2x128xf32>
    %133 = arith.addf %132, %131 : vector<2x128xf32>
    %134 = arith.mulf %123, %133 : vector<2x128xf32>
    %135 = vector.extract_strided_slice %134 {offsets = [0, 0], sizes = [2, 32], strides = [1, 1]} : vector<2x128xf32> to vector<2x32xf32>
    %cst_55 = arith.constant dense<0.000000e+00> : vector<2x128xf32>
    %136 = tpu.matmul %135, %7, %cst_55 {dimension_numbers = #tpu.dot_dimension_numbers<[1], [0], [0], [1], [0, 0, 1, 1], [], []>} : vector<2x32xf32>, vector<32x128xf32>, vector<2x128xf32> -> vector<2x128xf32>
    %137 = vector.broadcast %17 : vector<1x128xf32> to vector<2x128xf32>
    %138 = arith.addf %136, %137 : vector<2x128xf32>
    %139 = vector.broadcast %18 : vector<1x128xf32> to vector<2x128xf32>
    %140 = arith.addf %138, %139 : vector<2x128xf32>
    %cst_56 = arith.constant dense<0xFF800000> : vector<2xf32>
    %141 = vector.multi_reduction <maximumf>, %140, %cst_56 [1] : vector<2x128xf32> to vector<2xf32>
    %142 = vector.shape_cast %141 : vector<2xf32> to vector<2x1xf32>
    %143 = vector.broadcast %142 : vector<2x1xf32> to vector<2x128xf32>
    %144 = arith.subf %140, %143 : vector<2x128xf32>
    %145 = math.exp %144 : vector<2x128xf32>
    %cst_57 = arith.constant dense<0.000000e+00> : vector<2xf32>
    %146 = vector.multi_reduction <add>, %145, %cst_57 [1] : vector<2x128xf32> to vector<2xf32>
    %147 = vector.shape_cast %146 : vector<2xf32> to vector<2x1xf32>
    %148 = tpu.reciprocal %147 {approx = true} : vector<2x1xf32> -> vector<2x1xf32>
    %149 = vector.broadcast %148 : vector<2x1xf32> to vector<2x128xf32>
    %150 = arith.mulf %145, %149 : vector<2x128xf32>
    %cst_58 = arith.constant dense<0.000000e+00> : vector<2x128xf32>
    %151 = tpu.matmul %116, %10, %cst_58 {dimension_numbers = #tpu.dot_dimension_numbers<[1], [0], [0], [1], [0, 0, 1, 1], [], []>} : vector<2x32xf32>, vector<32x128xf32>, vector<2x128xf32> -> vector<2x128xf32>
    %152 = arith.addf %151, %150 : vector<2x128xf32>
    %c0_59 = arith.constant 0 : index
    %c0_60 = arith.constant 0 : index
    %153 = vector.load %arg4[%c0_59, %c0_60] : memref<2x128xf32, #tpu.memory_space<vmem>>, vector<2x128xf32>
    tpu.vector_store %arg4[%c0_59, %c0_60], %152 {strides = array<i32>} : memref<2x128xf32, #tpu.memory_space<vmem>>, vector<2x128xf32>,
    return
  }
}

</mosaic_0001>

<llo_original>
// kernel: tpu_custom_call.1
$region0: #{tpu_custom_call.1}
  #allocation0 [shape = 'u32[]', space=smem, size = 0x4, offset = 0x4, fixed_abs, tag = 'smem constant byte address 0x4 - core index']
  #allocation1 [shape = 'u32[144,128]{1,0:T(1,128)}', space=vmem, size = 0x12000, scoped, tag = 'internal scratch']
  %s0 = inlined_call_operand.hbm [shape: f32[16,32], index: 0, kind: input, shape index: {}]
  %s1 = inlined_call_operand.hbm [shape: f32[480,128], index: 1, kind: input, shape index: {}]
  %s2 = inlined_call_operand.hbm [shape: f32[8,128], index: 2, kind: input, shape index: {}]
  %s3 = inlined_call_operand.hbm [shape: f32[16,128], index: 3, kind: output, shape index: {0}]
  %s4 = inlined_call_operand.hbm [shape: f32[2,128], index: 4, kind: output, shape index: {1}]
  %5 = xla_tuple %s3, %s4
  %s6 = sld [smem:[#allocation0]]
  $region42: #{tpu_custom_call.1} parent=0
    _
  %s8 = ssub.s32 1, %s6
  %s9 = scalar_select 0, %s8, %s6
  $region1: #{tpu_custom_call.1} parent=0
    #allocation2 [shape = 'u8[8192]{0}', space=vmem, size = 0x2000, scoped, tag = 'input window, operand 0, single buffered']
    #allocation3 [shape = 's32[1]{0}', space=sflag, size = 0x4, scoped, tag = 'scoped memory for tpu_custom_call.1']
    #allocation4 [shape = 's32[1]{0}', space=sflag, size = 0x4, scoped, tag = 'scoped memory for tpu_custom_call.1']
    #allocation5 [shape = 'u8[245760]{0}', space=vmem, size = 0x3c000, scoped, tag = 'input window, operand 1, single buffered']
    #allocation6 [shape = 's32[1]{0}', space=sflag, size = 0x4, scoped, tag = 'scoped memory for tpu_custom_call.1']
    #allocation7 [shape = 'u8[4096]{0}', space=vmem, size = 0x1000, scoped, tag = 'input window, operand 2, single buffered']
    #allocation8 [shape = 'u8[8192]{0}', space=vmem, size = 0x2000, scoped, tag = 'output window, operand 0, single buffered']
    #allocation9 [shape = 'u8[1024]{0}', space=vmem, size = 0x400, scoped, tag = 'output window, operand 1, single buffered']
    #allocation10 [shape = 's32[1]{0}', space=sflag, size = 0x4, scoped, tag = 'scoped memory for tpu_custom_call.1']
    %10 = vsyncpa [#allocation3], 0
    %11 = vsyncpa [#allocation6], 0
    %12 = vsyncpa [#allocation4], 0
    %13 = vsyncpa [#allocation10], 0
    // Predicated region
    $region2: #{tpu_custom_call.1} parent=1 // pred_check
      _
    $region3: #{tpu_custom_call.1} parent=1 // pred_check_branch
      %15 = sbr.rel (0) target = $region5
    $region4: #{tpu_custom_call.1} parent=1 // pred_region
      %s17 = ssub.s32 256, 256
      %18 = vsyncadd [#allocation3], %s17
      %s19 = sshll.u32 [#allocation2], 4
      %s20 = int_to_ptr.vmem [resolvable:$true] %s19
      %25 = dma.hbm_to_vmem [thread:$0]  %s0, 256, %s20, [#allocation3], 128, 128, 8
    $region5: #{tpu_custom_call.1} parent=1 // pred_fallthru
      _
    // Predicated region
    $region6: #{tpu_custom_call.1} parent=1 // pred_check
      _
    $region7: #{tpu_custom_call.1} parent=1 // pred_check_branch
      %27 = sbr.rel (0) target = $region9
    $region8: #{tpu_custom_call.1} parent=1 // pred_region
      %s29 = ssub.s32 7680, 7680
      %30 = vsyncadd [#allocation6], %s29
      %s31 = sshll.u32 [#allocation5], 4
      %s32 = int_to_ptr.vmem [resolvable:$true] %s31
      %37 = dma.hbm_to_vmem [thread:$0]  %s1, 7680, %s32, [#allocation6], 128, 128, 8
    $region9: #{tpu_custom_call.1} parent=1 // pred_fallthru
      _
    // Predicated region
    $region10: #{tpu_custom_call.1} parent=1 // pred_check
      _
    $region11: #{tpu_custom_call.1} parent=1 // pred_check_branch
      %39 = sbr.rel (0) target = $region13
    $region12: #{tpu_custom_call.1} parent=1 // pred_region
      %s41 = ssub.s32 128, 128
      %42 = vsyncadd [#allocation6], %s41
      %s44 = sshll.u32 [#allocation7], 4
      %s45 = int_to_ptr.vmem [resolvable:$true] %s44
      %47 = dma.hbm_to_vmem [thread:$0]  %s2, 128, %s45, [#allocation6]
    $region13: #{tpu_custom_call.1} parent=1 // pred_fallthru
      _
    // Predicated region
    $region14: #{tpu_custom_call.1} parent=1 // pred_check
      _
    $region15: #{tpu_custom_call.1} parent=1 // pred_check_branch
      %49 = sbr.rel (0) target = $region17
    $region16: #{tpu_custom_call.1} parent=1 // pred_region
      %50 = dma.done [#allocation3], 256
    $region17: #{tpu_custom_call.1} parent=1 // pred_fallthru
      _
    // Predicated region
    $region18: #{tpu_custom_call.1} parent=1 // pred_check
      _
    $region19: #{tpu_custom_call.1} parent=1 // pred_check_branch
      %52 = sbr.rel (0) target = $region21
    $region20: #{tpu_custom_call.1} parent=1 // pred_region
      %53 = dma.done [#allocation6], 7680
    $region21: #{tpu_custom_call.1} parent=1 // pred_fallthru
      _
    // Predicated region
    $region22: #{tpu_custom_call.1} parent=1 // pred_check
      _
    $region23: #{tpu_custom_call.1} parent=1 // pred_check_branch
      %55 = sbr.rel (0) target = $region25
    $region24: #{tpu_custom_call.1} parent=1 // pred_region
      %56 = dma.done [#allocation6], 128
    $region25: #{tpu_custom_call.1} parent=1 // pred_fallthru
      _
    %v57 = vld [vmem:[#allocation5] sm:$0xff]
    %v58 = vld [vmem:[#allocation5 + $0x8] sm:$0xff]
    %v59 = vld [vmem:[#allocation5 + $0x10] sm:$0xff]
    %v60 = vld [vmem:[#allocation5 + $0x18] sm:$0xff]
    %v61 = vld [vmem:[#allocation5 + $0x20] sm:$0xff]
    %v62 = vld [vmem:[#allocation5 + $0x28] sm:$0xff]
    %v63 = vld [vmem:[#allocation5 + $0x30] sm:$0xff]
    %v64 = vld [vmem:[#allocation5 + $0x38] sm:$0xff]
    %v65 = vld [vmem:[#allocation5 + $0x40] sm:$0xff]
    %v66 = vld [vmem:[#allocation5 + $0x48] sm:$0xff]
    %v67 = vld [vmem:[#allocation5 + $0x50] sm:$0xff]
    %v68 = vld [vmem:[#allocation5 + $0x58] sm:$0xff]
    %v69 = vld [vmem:[#allocation5 + $0x60] sm:$0xff]
    %v70 = vld [vmem:[#allocation5 + $0x68] sm:$0xff]
    %v71 = vld [vmem:[#allocation5 + $0x70] sm:$0xff]
    %v72 = vld [vmem:[#allocation5 + $0x78] sm:$0xff]
    %v73 = vld [vmem:[#allocation5 + $0x80] sm:$0xff]
    %v74 = vld [vmem:[#allocation5 + $0x88] sm:$0xff]
    %v75 = vld [vmem:[#allocation5 + $0x90] sm:$0xff]
    %v76 = vld [vmem:[#allocation5 + $0x98] sm:$0xff]
    %v77 = vld [vmem:[#allocation5 + $0xa0] sm:$0xff]
    %v78 = vld [vmem:[#allocation5 + $0xa8] sm:$0xff]
    %v79 = vld [vmem:[#allocation5 + $0xb0] sm:$0xff]
    %v80 = vld [vmem:[#allocation5 + $0xb8] sm:$0xff]
    %v81 = vld [vmem:[#allocation5 + $0xc0] sm:$0xff]
    %v82 = vld [vmem:[#allocation5 + $0xc8] sm:$0xff]
    %v83 = vld [vmem:[#allocation5 + $0xd0] sm:$0xff]
    %v84 = vld [vmem:[#allocation5 + $0xd8] sm:$0xff]
    %v85 = vld [vmem:[#allocation5 + $0xe0] sm:$0xff]
    %v86 = vld [vmem:[#allocation5 + $0xe8] sm:$0xff]
    %v87 = vld [vmem:[#allocation5 + $0xf0] sm:$0xff]
    %v88 = vld [vmem:[#allocation5 + $0xf8] sm:$0xff]
    %v89 = vld [vmem:[#allocation5 + $0x100] sm:$0xff]
    %v90 = vld [vmem:[#allocation5 + $0x108] sm:$0xff]
    %v91 = vld [vmem:[#allocation5 + $0x110] sm:$0xff]
    %v92 = vld [vmem:[#allocation5 + $0x118] sm:$0xff]
    %v93 = vld [vmem:[#allocation5 + $0x120] sm:$0xff]
    %v94 = vld [vmem:[#allocation5 + $0x128] sm:$0xff]
    %v95 = vld [vmem:[#allocation5 + $0x130] sm:$0xff]
    %v96 = vld [vmem:[#allocation5 + $0x138] sm:$0xff]
    %v97 = vld [vmem:[#allocation5 + $0x140] sm:$0xff]
    %v98 = vld [vmem:[#allocation5 + $0x148] sm:$0xff]
    %v99 = vld [vmem:[#allocation5 + $0x150] sm:$0xff]
    %v100 = vld [vmem:[#allocation5 + $0x158] sm:$0xff]
    %v101 = vld [vmem:[#allocation5 + $0x160] sm:$0xff]
    %v102 = vld [vmem:[#allocation5 + $0x168] sm:$0xff]
    %v103 = vld [vmem:[#allocation5 + $0x170] sm:$0xff]
    %v104 = vld [vmem:[#allocation5 + $0x178] sm:$0xff]
    %v105 = vld [vmem:[#allocation5 + $0x180] sm:$0xff]
    %v106 = vld [vmem:[#allocation5 + $0x188] sm:$0xff]
    %v107 = vld [vmem:[#allocation5 + $0x190] sm:$0xff]
    %v108 = vld [vmem:[#allocation5 + $0x198] sm:$0xff]
    %v109 = vld [vmem:[#allocation5 + $0x1a0] sm:$0xff]
    %v110 = vld [vmem:[#allocation5 + $0x1a8] sm:$0xff]
    %v111 = vld [vmem:[#allocation5 + $0x1b0] sm:$0xff]
    %v112 = vld [vmem:[#allocation5 + $0x1b8] sm:$0xff]
    %v113 = vld [vmem:[#allocation5 + $0x1c0] sm:$0xff]
    %v114 = vld [vmem:[#allocation5 + $0x1c8] sm:$0xff]
    %v115 = vld [vmem:[#allocation5 + $0x1d0] sm:$0xff]
    %v116 = vld [vmem:[#allocation5 + $0x1d8] sm:$0xff]
    %v117 = vld [vmem:[#allocation7] sm:$0x1]
    %v118 = vld [vmem:[#allocation7 + $0x1] sm:$0x1]
    %v119 = vld [vmem:[#allocation7 + $0x2] sm:$0x1]
    %v120 = vld [vmem:[#allocation7 + $0x3] sm:$0x1]
    %v121 = vld [vmem:[#allocation7 + $0x4] sm:$0x1]
    %v122 = vld [vmem:[#allocation7 + $0x5] sm:$0x1]
    %v123 = vld [vmem:[#allocation7 + $0x6] sm:$0x1]
    %v124 = vld [vmem:[#allocation7 + $0x7] sm:$0x1]
    %v125 = vld [vmem:[#allocation2] sm:$0xff]
    %v126 = vld [vmem:[#allocation2 + $0x8] sm:$0xff]
    %v127 = vlaneseq
    %v128 = vshrl.u32 %v127, 7
    %v129 = vsub.s32 0, %v128
    %v130 = vrot.slane %v117, %v129
    %vm131 = vcmask 261120
    %v133 = vsel %vm131, %v125, 0
    %v136 = vsel %vm131, %v126, 0
    %138 = vmatprep.subr.mxu0 0.0
    %139 = vmatpush1.msra.mxu0 0.0
    %140 = vmatprep.subr.mxu0 0.0
    %141 = vmatpush1.msra.mxu0 0.0
    %142 = vmatprep.subr.mxu0 0.0
    %143 = vmatpush1.msra.mxu0 0.0
    %144 = vmatprep.subr.mxu0 0.0
    %145 = vmatpush1.msra.mxu0 0.0
    %146 = vmatprep.subr.mxu0 0.0
    %147 = vmatpush1.msra.mxu0 0.0
    %148 = vmatprep.subr.mxu0 0.0
    %149 = vmatpush1.msra.mxu0 0.0
    %150 = vmatprep.subr.mxu0 0.0
    %151 = vmatpush1.msra.mxu0 0.0
    %152 = vmatprep.subr.mxu0 0.0
    %153 = vmatpush1.msra.mxu0 0.0
    %154 = vmatprep.subr.mxu0 0.0
    %155 = vmatpush1.msra.mxu0 0.0
    %156 = vmatprep.subr.mxu0 0.0
    %157 = vmatpush1.msra.mxu0 0.0
    %158 = vmatprep.subr.mxu0 0.0
    %159 = vmatpush1.msra.mxu0 0.0
    %160 = vmatprep.subr.mxu0 0.0
    %161 = vmatpush1.msra.mxu0 0.0
    %162 = vmatprep.subr.mxu0 0.0
    %163 = vmatpush1.msra.mxu0 %v60
    %164 = vmatprep.subr.mxu0 0.0
    %165 = vmatpush1.msra.mxu0 %v59
    %166 = vmatprep.subr.mxu0 0.0
    %167 = vmatpush1.msra.mxu0 %v58
    %168 = vmatprep.subr.mxu0 0.0
    %169 = vmatpush1.msra.mxu0 %v57
    %170 = vmatprep.subr.mxu0 0.0
    %171 = vmatpush2.msra.mxu0 0.0
    %172 = vmatprep.subr.mxu0 0.0
    %173 = vmatpush2.msra.mxu0 0.0
    %174 = vmatprep.subr.mxu0 0.0
    %175 = vmatpush2.msra.mxu0 0.0
    %176 = vmatprep.subr.mxu0 0.0
    %177 = vmatpush2.msra.mxu0 0.0
    %178 = vmatprep.subr.mxu0 0.0
    %179 = vmatpush2.msra.mxu0 0.0
    %180 = vmatprep.subr.mxu0 0.0
    %181 = vmatpush2.msra.mxu0 0.0
    %182 = vmatprep.subr.mxu0 0.0
    %183 = vmatpush2.msra.mxu0 0.0
    %184 = vmatprep.subr.mxu0 0.0
    %185 = vmatpush2.msra.mxu0 0.0
    %186 = vmatprep.subr.mxu0 0.0
    %187 = vmatpush2.msra.mxu0 0.0
    %188 = vmatprep.subr.mxu0 0.0
    %189 = vmatpush2.msra.mxu0 0.0
    %190 = vmatprep.subr.mxu0 0.0
    %191 = vmatpush2.msra.mxu0 0.0
    %192 = vmatprep.subr.mxu0 0.0
    %193 = vmatpush2.msra.mxu0 0.0
    %194 = vmatprep.subr.mxu0 0.0
    %195 = vmatpush2.msra.mxu0 0.0
    %196 = vmatprep.subr.mxu0 0.0
    %197 = vmatpush2.msra.mxu0 0.0
    %198 = vmatprep.subr.mxu0 0.0
    %199 = vmatpush2.msra.mxu0 0.0
    %200 = vmatprep.subr.mxu0 0.0
    %201 = vmatpush2.msra.mxu0 0.0
    %202 = vmatprep.mubr.f32.mxu0 0.0
    %203 = vmatmul.mubr.f32.gmra.mxu0 %v133
    %v204 = vpop.f32.mrf.mxu0
    %v205 = vadd.f32 %v130, %v204
    %v206 = vpop.f32.mrf.mxu0
    %207 = vmatprep.mubr.f32.mxu0 0.0
    %208 = vmatmul.mubr.f32.gmra.mxu0 %v136
    %v209 = vpop.f32.mrf.mxu0
    %v210 = vadd.f32 %v130, %v209
    %v211 = vpop.f32.mrf.mxu0
    %212 = vdwg.mxu0
    %v213 = vmul.f32 %v205, 0.5
    %v214 = vmul.f32 %v210, 0.5
    %217 = vrot.lane.b32.xlu0 %v205, 96
    %v218 = vpop.permute.xlu0 %217
    %219 = vrot.lane.b32.xlu0 %v210, 96
    %v220 = vpop.permute.xlu0 %219
    %v223 = vmul.f32 %v213, %v218
    %v224 = vmul.f32 %v213, %v220
    %v225 = vmul.f32 %v214, %v218
    %v226 = vmul.f32 %v214, %v220
    %v228 = vsel %vm131, %v223, 0
    %v231 = vsel %vm131, %v224, 0
    %v234 = vsel %vm131, %v225, 0
    %v237 = vsel %vm131, %v226, 0
    %239 = vmatprep.subr.mxu0 0.0
    %240 = vmatpush1.msra.mxu0 0.0
    %241 = vmatprep.subr.mxu0 0.0
    %242 = vmatpush1.msra.mxu0 0.0
    %243 = vmatprep.subr.mxu0 0.0
    %244 = vmatpush1.msra.mxu0 0.0
    %245 = vmatprep.subr.mxu0 0.0
    %246 = vmatpush1.msra.mxu0 0.0
    %247 = vmatprep.subr.mxu0 0.0
    %248 = vmatpush1.msra.mxu0 0.0
    %249 = vmatprep.subr.mxu0 0.0
    %250 = vmatpush1.msra.mxu0 0.0
    %251 = vmatprep.subr.mxu0 0.0
    %252 = vmatpush1.msra.mxu0 0.0
    %253 = vmatprep.subr.mxu0 0.0
    %254 = vmatpush1.msra.mxu0 0.0
    %255 = vmatprep.subr.mxu0 0.0
    %256 = vmatpush1.msra.mxu0 0.0
    %257 = vmatprep.subr.mxu0 0.0
    %258 = vmatpush1.msra.mxu0 0.0
    %259 = vmatprep.subr.mxu0 0.0
    %260 = vmatpush1.msra.mxu0 0.0
    %261 = vmatprep.subr.mxu0 0.0
    %262 = vmatpush1.msra.mxu0 0.0
    %263 = vmatprep.subr.mxu0 0.0
    %264 = vmatpush1.msra.mxu0 %v96
    %265 = vmatprep.subr.mxu0 0.0
    %266 = vmatpush1.msra.mxu0 %v95
    %267 = vmatprep.subr.mxu0 0.0
    %268 = vmatpush1.msra.mxu0 %v94
    %269 = vmatprep.subr.mxu0 0.0
    %270 = vmatpush1.msra.mxu0 %v93
    %271 = vmatprep.subr.mxu0 0.0
    %272 = vmatpush2.msra.mxu0 0.0
    %273 = vmatprep.subr.mxu0 0.0
    %274 = vmatpush2.msra.mxu0 0.0
    %275 = vmatprep.subr.mxu0 0.0
    %276 = vmatpush2.msra.mxu0 0.0
    %277 = vmatprep.subr.mxu0 0.0
    %278 = vmatpush2.msra.mxu0 0.0
    %279 = vmatprep.subr.mxu0 0.0
    %280 = vmatpush2.msra.mxu0 0.0
    %281 = vmatprep.subr.mxu0 0.0
    %282 = vmatpush2.msra.mxu0 0.0
    %283 = vmatprep.subr.mxu0 0.0
    %284 = vmatpush2.msra.mxu0 0.0
    %285 = vmatprep.subr.mxu0 0.0
    %286 = vmatpush2.msra.mxu0 0.0
    %287 = vmatprep.subr.mxu0 0.0
    %288 = vmatpush2.msra.mxu0 0.0
    %289 = vmatprep.subr.mxu0 0.0
    %290 = vmatpush2.msra.mxu0 0.0
    %291 = vmatprep.subr.mxu0 0.0
    %292 = vmatpush2.msra.mxu0 0.0
    %293 = vmatprep.subr.mxu0 0.0
    %294 = vmatpush2.msra.mxu0 0.0
    %295 = vmatprep.subr.mxu0 0.0
    %296 = vmatpush2.msra.mxu0 0.0
    %297 = vmatprep.subr.mxu0 0.0
    %298 = vmatpush2.msra.mxu0 0.0
    %299 = vmatprep.subr.mxu0 0.0
    %300 = vmatpush2.msra.mxu0 0.0
    %301 = vmatprep.subr.mxu0 0.0
    %302 = vmatpush2.msra.mxu0 0.0
    %303 = vmatprep.mubr.f32.mxu0 0.0
    %304 = vmatmul.mubr.f32.gmra.mxu0 %v228
    %v305 = vpop.f32.mrf.mxu0
    %v306 = vadd.f32 0.0, %v305
    %v307 = vpop.f32.mrf.mxu0
    %308 = vmatprep.mubr.f32.mxu0 0.0
    %309 = vmatmul.mubr.f32.gmra.mxu0 %v231
    %v310 = vpop.f32.mrf.mxu0
    %v311 = vadd.f32 0.0, %v310
    %v312 = vpop.f32.mrf.mxu0
    %313 = vmatprep.mubr.f32.mxu0 0.0
    %314 = vmatmul.mubr.f32.gmra.mxu0 %v234
    %v315 = vpop.f32.mrf.mxu0
    %v316 = vadd.f32 0.0, %v315
    %v317 = vpop.f32.mrf.mxu0
    %318 = vmatprep.mubr.f32.mxu0 0.0
    %319 = vmatmul.mubr.f32.gmra.mxu0 %v237
    %v320 = vpop.f32.mrf.mxu0
    %v321 = vadd.f32 0.0, %v320
    %v322 = vpop.f32.mrf.mxu0
    %323 = vdwg.mxu0
    %v324 = vmax.f32 %v306, %v311
    %v325 = vmax.f32 %v316, %v321
    %v326 = vsub.f32 %v306, %v324
    %v327 = vsub.f32 %v311, %v324
    %v328 = vsub.f32 %v316, %v325
    %v329 = vsub.f32 %v321, %v325
    %v330 = vmul.f32 %v326, 1.442695
    %v331 = vpow.pop %v330
    %v332 = vmul.f32 %v327, 1.442695
    %v333 = vpow.pop %v332
    %v334 = vmul.f32 %v328, 1.442695
    %v335 = vpow.pop %v334
    %v336 = vmul.f32 %v329, 1.442695
    %v337 = vpow.pop %v336
    %v338 = vadd.f32 %v331, %v333
    %v339 = vadd.f32 %v335, %v337
    %v340 = vrcp.pop %v338
    %v341 = vrcp.pop %v339
    %v342 = vmul.f32 %v331, %v340
    %v343 = vmul.f32 %v333, %v340
    %v344 = vmul.f32 %v335, %v341
    %v345 = vmul.f32 %v337, %v341
    %346 = vmatprep.subr.mxu0 0.0
    %347 = vmatpush1.msra.mxu0 %v112
    %348 = vmatprep.subr.mxu0 0.0
    %349 = vmatpush1.msra.mxu0 %v111
    %350 = vmatprep.subr.mxu0 0.0
    %351 = vmatpush1.msra.mxu0 %v110
    %352 = vmatprep.subr.mxu0 0.0
    %353 = vmatpush1.msra.mxu0 %v109
    %354 = vmatprep.subr.mxu0 0.0
    %355 = vmatpush1.msra.mxu0 %v108
    %356 = vmatprep.subr.mxu0 0.0
    %357 = vmatpush1.msra.mxu0 %v107
    %358 = vmatprep.subr.mxu0 0.0
    %359 = vmatpush1.msra.mxu0 %v106
    %360 = vmatprep.subr.mxu0 0.0
    %361 = vmatpush1.msra.mxu0 %v105
    %362 = vmatprep.subr.mxu0 0.0
    %363 = vmatpush1.msra.mxu0 %v104
    %364 = vmatprep.subr.mxu0 0.0
    %365 = vmatpush1.msra.mxu0 %v103
    %366 = vmatprep.subr.mxu0 0.0
    %367 = vmatpush1.msra.mxu0 %v102
    %368 = vmatprep.subr.mxu0 0.0
    %369 = vmatpush1.msra.mxu0 %v101
    %370 = vmatprep.subr.mxu0 0.0
    %371 = vmatpush1.msra.mxu0 %v100
    %372 = vmatprep.subr.mxu0 0.0
    %373 = vmatpush1.msra.mxu0 %v99
    %374 = vmatprep.subr.mxu0 0.0
    %375 = vmatpush1.msra.mxu0 %v98
    %376 = vmatprep.subr.mxu0 0.0
    %377 = vmatpush1.msra.mxu0 %v97
    %378 = vmatprep.subr.mxu0 0.0
    %379 = vmatpush2.msra.mxu0 0.0
    %380 = vmatprep.subr.mxu0 0.0
    %381 = vmatpush2.msra.mxu0 0.0
    %382 = vmatprep.subr.mxu0 0.0
    %383 = vmatpush2.msra.mxu0 0.0
    %384 = vmatprep.subr.mxu0 0.0
    %385 = vmatpush2.msra.mxu0 0.0
    %386 = vmatprep.subr.mxu0 0.0
    %387 = vmatpush2.msra.mxu0 0.0
    %388 = vmatprep.subr.mxu0 0.0
    %389 = vmatpush2.msra.mxu0 0.0
    %390 = vmatprep.subr.mxu0 0.0
    %391 = vmatpush2.msra.mxu0 0.0
    %392 = vmatprep.subr.mxu0 0.0
    %393 = vmatpush2.msra.mxu0 0.0
    %394 = vmatprep.subr.mxu0 0.0
    %395 = vmatpush2.msra.mxu0 0.0
    %396 = vmatprep.subr.mxu0 0.0
    %397 = vmatpush2.msra.mxu0 0.0
    %398 = vmatprep.subr.mxu0 0.0
    %399 = vmatpush2.msra.mxu0 0.0
    %400 = vmatprep.subr.mxu0 0.0
    %401 = vmatpush2.msra.mxu0 0.0
    %402 = vmatprep.subr.mxu0 0.0
    %403 = vmatpush2.msra.mxu0 0.0
    %404 = vmatprep.subr.mxu0 0.0
    %405 = vmatpush2.msra.mxu0 0.0
    %406 = vmatprep.subr.mxu0 0.0
    %407 = vmatpush2.msra.mxu0 0.0
    %408 = vmatprep.subr.mxu0 0.0
    %409 = vmatpush2.msra.mxu0 0.0
    %410 = vmatprep.mubr.f32.mxu0 0.0
    %411 = vmatmul.mubr.f32.gmra.mxu0 %v342
    %v412 = vpop.f32.mrf.mxu0
    %v413 = vadd.f32 0.0, %v412
    %v414 = vpop.f32.mrf.mxu0
    %415 = vmatprep.mubr.f32.mxu0 0.0
    %416 = vmatmul.mubr.f32.gmra.mxu0 %v343
    %v417 = vpop.f32.mrf.mxu0
    %v418 = vadd.f32 0.0, %v417
    %v419 = vpop.f32.mrf.mxu0
    %420 = vmatprep.mubr.f32.mxu0 0.0
    %421 = vmatmul.mubr.f32.gmra.mxu0 %v344
    %v422 = vpop.f32.mrf.mxu0
    %v423 = vadd.f32 0.0, %v422
    %v424 = vpop.f32.mrf.mxu0
    %425 = vmatprep.mubr.f32.mxu0 0.0
    %426 = vmatmul.mubr.f32.gmra.mxu0 %v345
    %v427 = vpop.f32.mrf.mxu0
    %v428 = vadd.f32 0.0, %v427
    %v429 = vpop.f32.mrf.mxu0
    %430 = vdwg.mxu0
    %431 = vrot.lane.b32.xlu0 %v205, 64
    %v432 = vpop.permute.xlu0 %431
    %433 = vrot.lane.b32.xlu0 %v210, 64
    %v434 = vpop.permute.xlu0 %433
    %v437 = vmul.f32 %v413, %v432
    %v438 = vmul.f32 %v418, %v434
    %v439 = vmul.f32 %v423, %v432
    %v440 = vmul.f32 %v428, %v434
    %v441 = vsel %vm131, %v437, 0.0
    %v442 = vsel %vm131, %v438, 0.0
    %v443 = vadd.f32 %v441, %v442
    %v444 = vsel %vm131, %v439, 0.0
    %v445 = vsel %vm131, %v440, 0.0
    %v446 = vadd.f32 %v444, %v445
    %v447 = vlaneseq
    %v448 = vshrl.u32 %v447, 7
    %v449 = vsub.s32 0, %v448
    %v450 = vrot.slane %v118, %v449
    %v452 = vsel %vm131, %v443, 0
    %v455 = vsel %vm131, %v446, 0
    %457 = vmatprep.subr.mxu0 0.0
    %458 = vmatpush1.msra.mxu0 0.0
    %459 = vmatprep.subr.mxu0 0.0
    %460 = vmatpush1.msra.mxu0 0.0
    %461 = vmatprep.subr.mxu0 0.0
    %462 = vmatpush1.msra.mxu0 0.0
    %463 = vmatprep.subr.mxu0 0.0
    %464 = vmatpush1.msra.mxu0 0.0
    %465 = vmatprep.subr.mxu0 0.0
    %466 = vmatpush1.msra.mxu0 0.0
    %467 = vmatprep.subr.mxu0 0.0
    %468 = vmatpush1.msra.mxu0 0.0
    %469 = vmatprep.subr.mxu0 0.0
    %470 = vmatpush1.msra.mxu0 0.0
    %471 = vmatprep.subr.mxu0 0.0
    %472 = vmatpush1.msra.mxu0 0.0
    %473 = vmatprep.subr.mxu0 0.0
    %474 = vmatpush1.msra.mxu0 0.0
    %475 = vmatprep.subr.mxu0 0.0
    %476 = vmatpush1.msra.mxu0 0.0
    %477 = vmatprep.subr.mxu0 0.0
    %478 = vmatpush1.msra.mxu0 0.0
    %479 = vmatprep.subr.mxu0 0.0
    %480 = vmatpush1.msra.mxu0 0.0
    %481 = vmatprep.subr.mxu0 0.0
    %482 = vmatpush1.msra.mxu0 %v64
    %483 = vmatprep.subr.mxu0 0.0
    %484 = vmatpush1.msra.mxu0 %v63
    %485 = vmatprep.subr.mxu0 0.0
    %486 = vmatpush1.msra.mxu0 %v62
    %487 = vmatprep.subr.mxu0 0.0
    %488 = vmatpush1.msra.mxu0 %v61
    %489 = vmatprep.subr.mxu0 0.0
    %490 = vmatpush2.msra.mxu0 0.0
    %491 = vmatprep.subr.mxu0 0.0
    %492 = vmatpush2.msra.mxu0 0.0
    %493 = vmatprep.subr.mxu0 0.0
    %494 = vmatpush2.msra.mxu0 0.0
    %495 = vmatprep.subr.mxu0 0.0
    %496 = vmatpush2.msra.mxu0 0.0
    %497 = vmatprep.subr.mxu0 0.0
    %498 = vmatpush2.msra.mxu0 0.0
    %499 = vmatprep.subr.mxu0 0.0
    %500 = vmatpush2.msra.mxu0 0.0
    %501 = vmatprep.subr.mxu0 0.0
    %502 = vmatpush2.msra.mxu0 0.0
    %503 = vmatprep.subr.mxu0 0.0
    %504 = vmatpush2.msra.mxu0 0.0
    %505 = vmatprep.subr.mxu0 0.0
    %506 = vmatpush2.msra.mxu0 0.0
    %507 = vmatprep.subr.mxu0 0.0
    %508 = vmatpush2.msra.mxu0 0.0
    %509 = vmatprep.subr.mxu0 0.0
    %510 = vmatpush2.msra.mxu0 0.0
    %511 = vmatprep.subr.mxu0 0.0
    %512 = vmatpush2.msra.mxu0 0.0
    %513 = vmatprep.subr.mxu0 0.0
    %514 = vmatpush2.msra.mxu0 0.0
    %515 = vmatprep.subr.mxu0 0.0
    %516 = vmatpush2.msra.mxu0 0.0
    %517 = vmatprep.subr.mxu0 0.0
    %518 = vmatpush2.msra.mxu0 0.0
    %519 = vmatprep.subr.mxu0 0.0
    %520 = vmatpush2.msra.mxu0 0.0
    %521 = vmatprep.mubr.f32.mxu0 0.0
    %522 = vmatmul.mubr.f32.gmra.mxu0 %v452
    %v523 = vpop.f32.mrf.mxu0
    %v524 = vadd.f32 %v450, %v523
    %v525 = vpop.f32.mrf.mxu0
    %526 = vmatprep.mubr.f32.mxu0 0.0
    %527 = vmatmul.mubr.f32.gmra.mxu0 %v455
    %v528 = vpop.f32.mrf.mxu0
    %v529 = vadd.f32 %v450, %v528
    %v530 = vpop.f32.mrf.mxu0
    %531 = vdwg.mxu0
    %v532 = vlaneseq
    %v533 = vshrl.u32 %v532, 7
    %v534 = vsub.s32 0, %v533
    %v535 = vrot.slane %v119, %v534
    %v537 = vsel %vm131, %v524, 0
    %v540 = vsel %vm131, %v529, 0
    %542 = vmatprep.subr.mxu0 0.0
    %543 = vmatpush1.msra.mxu0 0.0
    %544 = vmatprep.subr.mxu0 0.0
    %545 = vmatpush1.msra.mxu0 0.0
    %546 = vmatprep.subr.mxu0 0.0
    %547 = vmatpush1.msra.mxu0 0.0
    %548 = vmatprep.subr.mxu0 0.0
    %549 = vmatpush1.msra.mxu0 0.0
    %550 = vmatprep.subr.mxu0 0.0
    %551 = vmatpush1.msra.mxu0 0.0
    %552 = vmatprep.subr.mxu0 0.0
    %553 = vmatpush1.msra.mxu0 0.0
    %554 = vmatprep.subr.mxu0 0.0
    %555 = vmatpush1.msra.mxu0 0.0
    %556 = vmatprep.subr.mxu0 0.0
    %557 = vmatpush1.msra.mxu0 0.0
    %558 = vmatprep.subr.mxu0 0.0
    %559 = vmatpush1.msra.mxu0 0.0
    %560 = vmatprep.subr.mxu0 0.0
    %561 = vmatpush1.msra.mxu0 0.0
    %562 = vmatprep.subr.mxu0 0.0
    %563 = vmatpush1.msra.mxu0 0.0
    %564 = vmatprep.subr.mxu0 0.0
    %565 = vmatpush1.msra.mxu0 0.0
    %566 = vmatprep.subr.mxu0 0.0
    %567 = vmatpush1.msra.mxu0 %v68
    %568 = vmatprep.subr.mxu0 0.0
    %569 = vmatpush1.msra.mxu0 %v67
    %570 = vmatprep.subr.mxu0 0.0
    %571 = vmatpush1.msra.mxu0 %v66
    %572 = vmatprep.subr.mxu0 0.0
    %573 = vmatpush1.msra.mxu0 %v65
    %574 = vmatprep.subr.mxu0 0.0
    %575 = vmatpush2.msra.mxu0 0.0
    %576 = vmatprep.subr.mxu0 0.0
    %577 = vmatpush2.msra.mxu0 0.0
    %578 = vmatprep.subr.mxu0 0.0
    %579 = vmatpush2.msra.mxu0 0.0
    %580 = vmatprep.subr.mxu0 0.0
    %581 = vmatpush2.msra.mxu0 0.0
    %582 = vmatprep.subr.mxu0 0.0
    %583 = vmatpush2.msra.mxu0 0.0
    %584 = vmatprep.subr.mxu0 0.0
    %585 = vmatpush2.msra.mxu0 0.0
    %586 = vmatprep.subr.mxu0 0.0
    %587 = vmatpush2.msra.mxu0 0.0
    %588 = vmatprep.subr.mxu0 0.0
    %589 = vmatpush2.msra.mxu0 0.0
    %590 = vmatprep.subr.mxu0 0.0
    %591 = vmatpush2.msra.mxu0 0.0
    %592 = vmatprep.subr.mxu0 0.0
    %593 = vmatpush2.msra.mxu0 0.0
    %594 = vmatprep.subr.mxu0 0.0
    %595 = vmatpush2.msra.mxu0 0.0
    %596 = vmatprep.subr.mxu0 0.0
    %597 = vmatpush2.msra.mxu0 0.0
    %598 = vmatprep.subr.mxu0 0.0
    %599 = vmatpush2.msra.mxu0 0.0
    %600 = vmatprep.subr.mxu0 0.0
    %601 = vmatpush2.msra.mxu0 0.0
    %602 = vmatprep.subr.mxu0 0.0
    %603 = vmatpush2.msra.mxu0 0.0
    %604 = vmatprep.subr.mxu0 0.0
    %605 = vmatpush2.msra.mxu0 0.0
    %606 = vmatprep.mubr.f32.mxu0 0.0
    %607 = vmatmul.mubr.f32.gmra.mxu0 %v537
    %v608 = vpop.f32.mrf.mxu0
    %v609 = vadd.f32 %v535, %v608
    %v610 = vpop.f32.mrf.mxu0
    %611 = vmatprep.mubr.f32.mxu0 0.0
    %612 = vmatmul.mubr.f32.gmra.mxu0 %v540
    %v613 = vpop.f32.mrf.mxu0
    %v614 = vadd.f32 %v535, %v613
    %v615 = vpop.f32.mrf.mxu0
    %616 = vdwg.mxu0
    %v617 = vmul.f32 %v609, 0.5
    %v618 = vmul.f32 %v614, 0.5
    %v619 = vmul.f32 %v609, 0.044715
    %v620 = vmul.f32 %v614, 0.044715
    %v621 = vmul.f32 %v619, %v609
    %v622 = vmul.f32 %v620, %v614
    %v623 = vmul.f32 %v621, %v609
    %v624 = vmul.f32 %v622, %v614
    %v625 = vadd.f32 %v609, %v623
    %v626 = vadd.f32 %v614, %v624
    %v627 = vmul.f32 %v625, 0.7978846
    %v628 = vmul.f32 %v626, 0.7978846
    %v629 = vtanh.pop %v627
    %v630 = vtanh.pop %v628
    %v631 = vadd.f32 %v629, 1.0
    %v632 = vadd.f32 %v630, 1.0
    %v633 = vmul.f32 %v617, %v631
    %v634 = vmul.f32 %v618, %v632
    %v635 = vlaneseq
    %v636 = vshrl.u32 %v635, 7
    %v637 = vsub.s32 0, %v636
    %v638 = vrot.slane %v120, %v637
    %vm639 = vcmask 523264
    %v641 = vsel %vm639, %v633, 0
    %v644 = vsel %vm639, %v634, 0
    %646 = vmatprep.subr.mxu0 0.0
    %647 = vmatpush1.msra.mxu0 0.0
    %648 = vmatprep.subr.mxu0 0.0
    %649 = vmatpush1.msra.mxu0 0.0
    %650 = vmatprep.subr.mxu0 0.0
    %651 = vmatpush1.msra.mxu0 0.0
    %652 = vmatprep.subr.mxu0 0.0
    %653 = vmatpush1.msra.mxu0 0.0
    %654 = vmatprep.subr.mxu0 0.0
    %655 = vmatpush1.msra.mxu0 0.0
    %656 = vmatprep.subr.mxu0 0.0
    %657 = vmatpush1.msra.mxu0 0.0
    %658 = vmatprep.subr.mxu0 0.0
    %659 = vmatpush1.msra.mxu0 0.0
    %660 = vmatprep.subr.mxu0 0.0
    %661 = vmatpush1.msra.mxu0 0.0
    %662 = vmatprep.subr.mxu0 0.0
    %663 = vmatpush1.msra.mxu0 %v76
    %664 = vmatprep.subr.mxu0 0.0
    %665 = vmatpush1.msra.mxu0 %v75
    %666 = vmatprep.subr.mxu0 0.0
    %667 = vmatpush1.msra.mxu0 %v74
    %668 = vmatprep.subr.mxu0 0.0
    %669 = vmatpush1.msra.mxu0 %v73
    %670 = vmatprep.subr.mxu0 0.0
    %671 = vmatpush1.msra.mxu0 %v72
    %672 = vmatprep.subr.mxu0 0.0
    %673 = vmatpush1.msra.mxu0 %v71
    %674 = vmatprep.subr.mxu0 0.0
    %675 = vmatpush1.msra.mxu0 %v70
    %676 = vmatprep.subr.mxu0 0.0
    %677 = vmatpush1.msra.mxu0 %v69
    %678 = vmatprep.subr.mxu0 0.0
    %679 = vmatpush2.msra.mxu0 0.0
    %680 = vmatprep.subr.mxu0 0.0
    %681 = vmatpush2.msra.mxu0 0.0
    %682 = vmatprep.subr.mxu0 0.0
    %683 = vmatpush2.msra.mxu0 0.0
    %684 = vmatprep.subr.mxu0 0.0
    %685 = vmatpush2.msra.mxu0 0.0
    %686 = vmatprep.subr.mxu0 0.0
    %687 = vmatpush2.msra.mxu0 0.0
    %688 = vmatprep.subr.mxu0 0.0
    %689 = vmatpush2.msra.mxu0 0.0
    %690 = vmatprep.subr.mxu0 0.0
    %691 = vmatpush2.msra.mxu0 0.0
    %692 = vmatprep.subr.mxu0 0.0
    %693 = vmatpush2.msra.mxu0 0.0
    %694 = vmatprep.subr.mxu0 0.0
    %695 = vmatpush2.msra.mxu0 0.0
    %696 = vmatprep.subr.mxu0 0.0
    %697 = vmatpush2.msra.mxu0 0.0
    %698 = vmatprep.subr.mxu0 0.0
    %699 = vmatpush2.msra.mxu0 0.0
    %700 = vmatprep.subr.mxu0 0.0
    %701 = vmatpush2.msra.mxu0 0.0
    %702 = vmatprep.subr.mxu0 0.0
    %703 = vmatpush2.msra.mxu0 0.0
    %704 = vmatprep.subr.mxu0 0.0
    %705 = vmatpush2.msra.mxu0 0.0
    %706 = vmatprep.subr.mxu0 0.0
    %707 = vmatpush2.msra.mxu0 0.0
    %708 = vmatprep.subr.mxu0 0.0
    %709 = vmatpush2.msra.mxu0 0.0
    %710 = vmatprep.mubr.f32.mxu0 0.0
    %711 = vmatmul.mubr.f32.gmra.mxu0 %v641
    %v712 = vpop.f32.mrf.mxu0
    %v713 = vadd.f32 %v638, %v712
    %v714 = vpop.f32.mrf.mxu0
    %715 = vmatprep.mubr.f32.mxu0 0.0
    %716 = vmatmul.mubr.f32.gmra.mxu0 %v644
    %v717 = vpop.f32.mrf.mxu0
    %v718 = vadd.f32 %v638, %v717
    %v719 = vpop.f32.mrf.mxu0
    %720 = vdwg.mxu0
    %v721 = vmul.f32 %v713, 0.5
    %v722 = vmul.f32 %v718, 0.5
    %v723 = vtanh.pop %v721
    %v724 = vtanh.pop %v722
    %v725 = vadd.f32 %v723, 1.0
    %v726 = vadd.f32 %v724, 1.0
    %v727 = vmul.f32 %v725, 0.5
    %v728 = vmul.f32 %v726, 0.5
    %729 = vst [vmem:[#allocation8] sm:$0xff] %v727
    %730 = vst [vmem:[#allocation8 + $0x8] sm:$0xff] %v728
    %v731 = vmul.f32 %v125, %v727
    %v732 = vmul.f32 %v126, %v728
    %v733 = vsel %vm131, %v731, 0.0
    %v734 = vrot.slane %v733, 4
    %v735 = vadd.f32 %v733, %v734
    %v736 = vrot.slane %v735, 2
    %v737 = vadd.f32 %v735, %v736
    %v738 = vrot.slane %v737, 1
    %v739 = vadd.f32 %v737, %v738
    %v740 = vsel %vm131, %v732, 0.0
    %v741 = vrot.slane %v740, 4
    %v742 = vadd.f32 %v740, %v741
    %v743 = vrot.slane %v742, 2
    %v744 = vadd.f32 %v742, %v743
    %v745 = vrot.slane %v744, 1
    %v746 = vadd.f32 %v744, %v745
    %v747 = vmul.f32 %v739, 0.125
    %v748 = vmul.f32 %v746, 0.125
    %v749 = vlaneseq
    %v750 = vshrl.u32 %v749, 7
    %v751 = vsub.s32 0, %v750
    %v752 = vrot.slane %v121, %v751
    %vm755 = vcmask 1041409
    %v756 = vsel %vm755, %v748, %v747
    %v757 = vsel %vm131, %v756, 0
    %759 = vmatprep.subr.mxu0 0.0
    %760 = vmatpush1.msra.mxu0 0.0
    %761 = vmatprep.subr.mxu0 0.0
    %762 = vmatpush1.msra.mxu0 0.0
    %763 = vmatprep.subr.mxu0 0.0
    %764 = vmatpush1.msra.mxu0 0.0
    %765 = vmatprep.subr.mxu0 0.0
    %766 = vmatpush1.msra.mxu0 0.0
    %767 = vmatprep.subr.mxu0 0.0
    %768 = vmatpush1.msra.mxu0 0.0
    %769 = vmatprep.subr.mxu0 0.0
    %770 = vmatpush1.msra.mxu0 0.0
    %771 = vmatprep.subr.mxu0 0.0
    %772 = vmatpush1.msra.mxu0 0.0
    %773 = vmatprep.subr.mxu0 0.0
    %774 = vmatpush1.msra.mxu0 0.0
    %775 = vmatprep.subr.mxu0 0.0
    %776 = vmatpush1.msra.mxu0 0.0
    %777 = vmatprep.subr.mxu0 0.0
    %778 = vmatpush1.msra.mxu0 0.0
    %779 = vmatprep.subr.mxu0 0.0
    %780 = vmatpush1.msra.mxu0 0.0
    %781 = vmatprep.subr.mxu0 0.0
    %782 = vmatpush1.msra.mxu0 0.0
    %783 = vmatprep.subr.mxu0 0.0
    %784 = vmatpush1.msra.mxu0 %v80
    %785 = vmatprep.subr.mxu0 0.0
    %786 = vmatpush1.msra.mxu0 %v79
    %787 = vmatprep.subr.mxu0 0.0
    %788 = vmatpush1.msra.mxu0 %v78
    %789 = vmatprep.subr.mxu0 0.0
    %790 = vmatpush1.msra.mxu0 %v77
    %791 = vmatprep.subr.mxu0 0.0
    %792 = vmatpush2.msra.mxu0 0.0
    %793 = vmatprep.subr.mxu0 0.0
    %794 = vmatpush2.msra.mxu0 0.0
    %795 = vmatprep.subr.mxu0 0.0
    %796 = vmatpush2.msra.mxu0 0.0
    %797 = vmatprep.subr.mxu0 0.0
    %798 = vmatpush2.msra.mxu0 0.0
    %799 = vmatprep.subr.mxu0 0.0
    %800 = vmatpush2.msra.mxu0 0.0
    %801 = vmatprep.subr.mxu0 0.0
    %802 = vmatpush2.msra.mxu0 0.0
    %803 = vmatprep.subr.mxu0 0.0
    %804 = vmatpush2.msra.mxu0 0.0
    %805 = vmatprep.subr.mxu0 0.0
    %806 = vmatpush2.msra.mxu0 0.0
    %807 = vmatprep.subr.mxu0 0.0
    %808 = vmatpush2.msra.mxu0 0.0
    %809 = vmatprep.subr.mxu0 0.0
    %810 = vmatpush2.msra.mxu0 0.0
    %811 = vmatprep.subr.mxu0 0.0
    %812 = vmatpush2.msra.mxu0 0.0
    %813 = vmatprep.subr.mxu0 0.0
    %814 = vmatpush2.msra.mxu0 0.0
    %815 = vmatprep.subr.mxu0 0.0
    %816 = vmatpush2.msra.mxu0 0.0
    %817 = vmatprep.subr.mxu0 0.0
    %818 = vmatpush2.msra.mxu0 0.0
    %819 = vmatprep.subr.mxu0 0.0
    %820 = vmatpush2.msra.mxu0 0.0
    %821 = vmatprep.subr.mxu0 0.0
    %822 = vmatpush2.msra.mxu0 0.0
    %823 = vmatprep.mubr.f32.mxu0 0.0
    %824 = vmatmul.mubr.f32.gmra.mxu0 %v757
    %v825 = vpop.f32.mrf.mxu0
    %v826 = vadd.f32 %v752, %v825
    %v827 = vpop.f32.mrf.mxu0
    %828 = vdwg.mxu0
    %v829 = vmul.f32 %v826, 0.5
    %v830 = vtanh.pop %v829
    %v831 = vadd.f32 %v830, 1.0
    %v832 = vmul.f32 %v831, 0.5
    %v833 = vtanh.pop %v826
    %835 = vrot.lane.b32.xlu0 %v833, 96
    %v836 = vpop.permute.xlu0 %835
    %v838 = vmul.f32 %v832, %v836
    %v839 = vtanh.pop %v838
    %841 = vrot.lane.b32.xlu0 %v839, 64
    %v842 = vpop.permute.xlu0 %841
    %v844 = vmul.f32 %v832, %v842
    %845 = vmatprep.subr.mxu0 0.0
    %846 = vmatpush1.msra.mxu0 0.0
    %847 = vmatprep.subr.mxu0 0.0
    %848 = vmatpush1.msra.mxu0 0.0
    %849 = vmatprep.subr.mxu0 0.0
    %850 = vmatpush1.msra.mxu0 0.0
    %851 = vmatprep.subr.mxu0 0.0
    %852 = vmatpush1.msra.mxu0 0.0
    %853 = vmatprep.subr.mxu0 0.0
    %854 = vmatpush1.msra.mxu0 0.0
    %855 = vmatprep.subr.mxu0 0.0
    %856 = vmatpush1.msra.mxu0 0.0
    %857 = vmatprep.subr.mxu0 0.0
    %858 = vmatpush1.msra.mxu0 0.0
    %859 = vmatprep.subr.mxu0 0.0
    %860 = vmatpush1.msra.mxu0 0.0
    %861 = vmatprep.subr.mxu0 0.0
    %862 = vmatpush1.msra.mxu0 0.0
    %863 = vmatprep.subr.mxu0 0.0
    %864 = vmatpush1.msra.mxu0 0.0
    %865 = vmatprep.subr.mxu0 0.0
    %866 = vmatpush1.msra.mxu0 0.0
    %867 = vmatprep.subr.mxu0 0.0
    %868 = vmatpush1.msra.mxu0 0.0
    %869 = vmatprep.subr.mxu0 0.0
    %870 = vmatpush1.msra.mxu0 %v88
    %871 = vmatprep.subr.mxu0 0.0
    %872 = vmatpush1.msra.mxu0 %v87
    %873 = vmatprep.subr.mxu0 0.0
    %874 = vmatpush1.msra.mxu0 %v86
    %875 = vmatprep.subr.mxu0 0.0
    %876 = vmatpush1.msra.mxu0 %v85
    %877 = vmatprep.subr.mxu0 0.0
    %878 = vmatpush2.msra.mxu0 0.0
    %879 = vmatprep.subr.mxu0 0.0
    %880 = vmatpush2.msra.mxu0 0.0
    %881 = vmatprep.subr.mxu0 0.0
    %882 = vmatpush2.msra.mxu0 0.0
    %883 = vmatprep.subr.mxu0 0.0
    %884 = vmatpush2.msra.mxu0 0.0
    %885 = vmatprep.subr.mxu0 0.0
    %886 = vmatpush2.msra.mxu0 0.0
    %887 = vmatprep.subr.mxu0 0.0
    %888 = vmatpush2.msra.mxu0 0.0
    %889 = vmatprep.subr.mxu0 0.0
    %890 = vmatpush2.msra.mxu0 0.0
    %891 = vmatprep.subr.mxu0 0.0
    %892 = vmatpush2.msra.mxu0 0.0
    %893 = vmatprep.subr.mxu0 0.0
    %894 = vmatpush2.msra.mxu0 0.0
    %895 = vmatprep.subr.mxu0 0.0
    %896 = vmatpush2.msra.mxu0 0.0
    %897 = vmatprep.subr.mxu0 0.0
    %898 = vmatpush2.msra.mxu0 0.0
    %899 = vmatprep.subr.mxu0 0.0
    %900 = vmatpush2.msra.mxu0 0.0
    %901 = vmatprep.subr.mxu0 0.0
    %902 = vmatpush2.msra.mxu0 0.0
    %903 = vmatprep.subr.mxu0 0.0
    %904 = vmatpush2.msra.mxu0 0.0
    %905 = vmatprep.subr.mxu0 0.0
    %906 = vmatpush2.msra.mxu0 0.0
    %907 = vmatprep.subr.mxu0 0.0
    %908 = vmatpush2.msra.mxu0 0.0
    %909 = vmatprep.mubr.f32.mxu0 0.0
    %910 = vmatmul.mubr.f32.gmra.mxu0 %v757
    %v911 = vpop.f32.mrf.mxu0
    %v912 = vadd.f32 0.0, %v911
    %v913 = vpop.f32.mrf.mxu0
    %914 = vdwg.mxu0
    %916 = vrot.lane.b32.xlu0 %v844, 64
    %v917 = vpop.permute.xlu0 %916
    %v918 = vsel %vm131, %v917, 0
    %920 = vmatprep.subr.mxu0 0.0
    %921 = vmatpush1.msra.mxu0 0.0
    %922 = vmatprep.subr.mxu0 0.0
    %923 = vmatpush1.msra.mxu0 0.0
    %924 = vmatprep.subr.mxu0 0.0
    %925 = vmatpush1.msra.mxu0 0.0
    %926 = vmatprep.subr.mxu0 0.0
    %927 = vmatpush1.msra.mxu0 0.0
    %928 = vmatprep.subr.mxu0 0.0
    %929 = vmatpush1.msra.mxu0 0.0
    %930 = vmatprep.subr.mxu0 0.0
    %931 = vmatpush1.msra.mxu0 0.0
    %932 = vmatprep.subr.mxu0 0.0
    %933 = vmatpush1.msra.mxu0 0.0
    %934 = vmatprep.subr.mxu0 0.0
    %935 = vmatpush1.msra.mxu0 0.0
    %936 = vmatprep.subr.mxu0 0.0
    %937 = vmatpush1.msra.mxu0 0.0
    %938 = vmatprep.subr.mxu0 0.0
    %939 = vmatpush1.msra.mxu0 0.0
    %940 = vmatprep.subr.mxu0 0.0
    %941 = vmatpush1.msra.mxu0 0.0
    %942 = vmatprep.subr.mxu0 0.0
    %943 = vmatpush1.msra.mxu0 0.0
    %944 = vmatprep.subr.mxu0 0.0
    %945 = vmatpush1.msra.mxu0 %v84
    %946 = vmatprep.subr.mxu0 0.0
    %947 = vmatpush1.msra.mxu0 %v83
    %948 = vmatprep.subr.mxu0 0.0
    %949 = vmatpush1.msra.mxu0 %v82
    %950 = vmatprep.subr.mxu0 0.0
    %951 = vmatpush1.msra.mxu0 %v81
    %952 = vmatprep.subr.mxu0 0.0
    %953 = vmatpush2.msra.mxu0 0.0
    %954 = vmatprep.subr.mxu0 0.0
    %955 = vmatpush2.msra.mxu0 0.0
    %956 = vmatprep.subr.mxu0 0.0
    %957 = vmatpush2.msra.mxu0 0.0
    %958 = vmatprep.subr.mxu0 0.0
    %959 = vmatpush2.msra.mxu0 0.0
    %960 = vmatprep.subr.mxu0 0.0
    %961 = vmatpush2.msra.mxu0 0.0
    %962 = vmatprep.subr.mxu0 0.0
    %963 = vmatpush2.msra.mxu0 0.0
    %964 = vmatprep.subr.mxu0 0.0
    %965 = vmatpush2.msra.mxu0 0.0
    %966 = vmatprep.subr.mxu0 0.0
    %967 = vmatpush2.msra.mxu0 0.0
    %968 = vmatprep.subr.mxu0 0.0
    %969 = vmatpush2.msra.mxu0 0.0
    %970 = vmatprep.subr.mxu0 0.0
    %971 = vmatpush2.msra.mxu0 0.0
    %972 = vmatprep.subr.mxu0 0.0
    %973 = vmatpush2.msra.mxu0 0.0
    %974 = vmatprep.subr.mxu0 0.0
    %975 = vmatpush2.msra.mxu0 0.0
    %976 = vmatprep.subr.mxu0 0.0
    %977 = vmatpush2.msra.mxu0 0.0
    %978 = vmatprep.subr.mxu0 0.0
    %979 = vmatpush2.msra.mxu0 0.0
    %980 = vmatprep.subr.mxu0 0.0
    %981 = vmatpush2.msra.mxu0 0.0
    %982 = vmatprep.subr.mxu0 0.0
    %983 = vmatpush2.msra.mxu0 0.0
    %984 = vmatprep.mubr.f32.mxu0 0.0
    %985 = vmatmul.mubr.f32.gmra.mxu0 %v918
    %v986 = vpop.f32.mrf.mxu0
    %v987 = vadd.f32 %v912, %v986
    %v988 = vpop.f32.mrf.mxu0
    %989 = vdwg.mxu0
    %v990 = vlaneseq
    %v991 = vshrl.u32 %v990, 7
    %v992 = vsub.s32 0, %v991
    %v993 = vrot.slane %v122, %v992
    %v994 = vadd.f32 %v987, %v993
    %v995 = vmul.f32 %v994, 0.5
    %v996 = vmul.f32 %v994, 0.044715
    %v997 = vmul.f32 %v996, %v994
    %v998 = vmul.f32 %v997, %v994
    %v999 = vadd.f32 %v994, %v998
    %v1000 = vmul.f32 %v999, 0.7978846
    %v1001 = vtanh.pop %v1000
    %v1002 = vadd.f32 %v1001, 1.0
    %v1003 = vmul.f32 %v995, %v1002
    %v1004 = vlaneseq
    %v1005 = vshrl.u32 %v1004, 7
    %v1006 = vsub.s32 0, %v1005
    %v1007 = vrot.slane %v123, %v1006
    %v1009 = vsel %vm131, %v1003, 0
    %1011 = vmatprep.subr.mxu0 0.0
    %1012 = vmatpush1.msra.mxu0 0.0
    %1013 = vmatprep.subr.mxu0 0.0
    %1014 = vmatpush1.msra.mxu0 0.0
    %1015 = vmatprep.subr.mxu0 0.0
    %1016 = vmatpush1.msra.mxu0 0.0
    %1017 = vmatprep.subr.mxu0 0.0
    %1018 = vmatpush1.msra.mxu0 0.0
    %1019 = vmatprep.subr.mxu0 0.0
    %1020 = vmatpush1.msra.mxu0 0.0
    %1021 = vmatprep.subr.mxu0 0.0
    %1022 = vmatpush1.msra.mxu0 0.0
    %1023 = vmatprep.subr.mxu0 0.0
    %1024 = vmatpush1.msra.mxu0 0.0
    %1025 = vmatprep.subr.mxu0 0.0
    %1026 = vmatpush1.msra.mxu0 0.0
    %1027 = vmatprep.subr.mxu0 0.0
    %1028 = vmatpush1.msra.mxu0 0.0
    %1029 = vmatprep.subr.mxu0 0.0
    %1030 = vmatpush1.msra.mxu0 0.0
    %1031 = vmatprep.subr.mxu0 0.0
    %1032 = vmatpush1.msra.mxu0 0.0
    %1033 = vmatprep.subr.mxu0 0.0
    %1034 = vmatpush1.msra.mxu0 0.0
    %1035 = vmatprep.subr.mxu0 0.0
    %1036 = vmatpush1.msra.mxu0 %v92
    %1037 = vmatprep.subr.mxu0 0.0
    %1038 = vmatpush1.msra.mxu0 %v91
    %1039 = vmatprep.subr.mxu0 0.0
    %1040 = vmatpush1.msra.mxu0 %v90
    %1041 = vmatprep.subr.mxu0 0.0
    %1042 = vmatpush1.msra.mxu0 %v89
    %1043 = vmatprep.subr.mxu0 0.0
    %1044 = vmatpush2.msra.mxu0 0.0
    %1045 = vmatprep.subr.mxu0 0.0
    %1046 = vmatpush2.msra.mxu0 0.0
    %1047 = vmatprep.subr.mxu0 0.0
    %1048 = vmatpush2.msra.mxu0 0.0
    %1049 = vmatprep.subr.mxu0 0.0
    %1050 = vmatpush2.msra.mxu0 0.0
    %1051 = vmatprep.subr.mxu0 0.0
    %1052 = vmatpush2.msra.mxu0 0.0
    %1053 = vmatprep.subr.mxu0 0.0
    %1054 = vmatpush2.msra.mxu0 0.0
    %1055 = vmatprep.subr.mxu0 0.0
    %1056 = vmatpush2.msra.mxu0 0.0
    %1057 = vmatprep.subr.mxu0 0.0
    %1058 = vmatpush2.msra.mxu0 0.0
    %1059 = vmatprep.subr.mxu0 0.0
    %1060 = vmatpush2.msra.mxu0 0.0
    %1061 = vmatprep.subr.mxu0 0.0
    %1062 = vmatpush2.msra.mxu0 0.0
    %1063 = vmatprep.subr.mxu0 0.0
    %1064 = vmatpush2.msra.mxu0 0.0
    %1065 = vmatprep.subr.mxu0 0.0
    %1066 = vmatpush2.msra.mxu0 0.0
    %1067 = vmatprep.subr.mxu0 0.0
    %1068 = vmatpush2.msra.mxu0 0.0
    %1069 = vmatprep.subr.mxu0 0.0
    %1070 = vmatpush2.msra.mxu0 0.0
    %1071 = vmatprep.subr.mxu0 0.0
    %1072 = vmatpush2.msra.mxu0 0.0
    %1073 = vmatprep.subr.mxu0 0.0
    %1074 = vmatpush2.msra.mxu0 0.0
    %1075 = vmatprep.mubr.f32.mxu0 0.0
    %1076 = vmatmul.mubr.f32.gmra.mxu0 %v1009
    %v1077 = vpop.f32.mrf.mxu0
    %v1078 = vadd.f32 %v1007, %v1077
    %v1079 = vpop.f32.mrf.mxu0
    %1080 = vdwg.mxu0
    %v1081 = vlaneseq
    %v1082 = vshrl.u32 %v1081, 7
    %v1083 = vsub.s32 0, %v1082
    %v1084 = vrot.slane %v124, %v1083
    %v1085 = vadd.f32 %v1078, %v1084
    %vm1086 = vcmask 1041408
    %v1087 = vsel %vm1086, %v1085, -inf
    %1088 = vmax.xlane.f32.xlu0 %v1087
    %v1089 = vpop.xlane.xlu0 %1088
    %v1090 = vsub.f32 %v1085, %v1089
    %v1091 = vmul.f32 %v1090, 1.442695
    %v1092 = vpow.pop %v1091
    %v1093 = vsel %vm1086, %v1092, 0.0
    %1094 = vadd.xlane.f32.xlu0 %v1093
    %v1095 = vpop.xlane.xlu0 %1094
    %v1096 = vrcp.pop %v1095
    %v1097 = vmul.f32 %v1092, %v1096
    %1098 = vmatprep.subr.mxu0 0.0
    %1099 = vmatpush1.msra.mxu0 0.0
    %1100 = vmatprep.subr.mxu0 0.0
    %1101 = vmatpush1.msra.mxu0 0.0
    %1102 = vmatprep.subr.mxu0 0.0
    %1103 = vmatpush1.msra.mxu0 0.0
    %1104 = vmatprep.subr.mxu0 0.0
    %1105 = vmatpush1.msra.mxu0 0.0
    %1106 = vmatprep.subr.mxu0 0.0
    %1107 = vmatpush1.msra.mxu0 0.0
    %1108 = vmatprep.subr.mxu0 0.0
    %1109 = vmatpush1.msra.mxu0 0.0
    %1110 = vmatprep.subr.mxu0 0.0
    %1111 = vmatpush1.msra.mxu0 0.0
    %1112 = vmatprep.subr.mxu0 0.0
    %1113 = vmatpush1.msra.mxu0 0.0
    %1114 = vmatprep.subr.mxu0 0.0
    %1115 = vmatpush1.msra.mxu0 0.0
    %1116 = vmatprep.subr.mxu0 0.0
    %1117 = vmatpush1.msra.mxu0 0.0
    %1118 = vmatprep.subr.mxu0 0.0
    %1119 = vmatpush1.msra.mxu0 0.0
    %1120 = vmatprep.subr.mxu0 0.0
    %1121 = vmatpush1.msra.mxu0 0.0
    %1122 = vmatprep.subr.mxu0 0.0
    %1123 = vmatpush1.msra.mxu0 %v116
    %1124 = vmatprep.subr.mxu0 0.0
    %1125 = vmatpush1.msra.mxu0 %v115
    %1126 = vmatprep.subr.mxu0 0.0
    %1127 = vmatpush1.msra.mxu0 %v114
    %1128 = vmatprep.subr.mxu0 0.0
    %1129 = vmatpush1.msra.mxu0 %v113
    %1130 = vmatprep.subr.mxu0 0.0
    %1131 = vmatpush2.msra.mxu0 0.0
    %1132 = vmatprep.subr.mxu0 0.0
    %1133 = vmatpush2.msra.mxu0 0.0
    %1134 = vmatprep.subr.mxu0 0.0
    %1135 = vmatpush2.msra.mxu0 0.0
    %1136 = vmatprep.subr.mxu0 0.0
    %1137 = vmatpush2.msra.mxu0 0.0
    %1138 = vmatprep.subr.mxu0 0.0
    %1139 = vmatpush2.msra.mxu0 0.0
    %1140 = vmatprep.subr.mxu0 0.0
    %1141 = vmatpush2.msra.mxu0 0.0
    %1142 = vmatprep.subr.mxu0 0.0
    %1143 = vmatpush2.msra.mxu0 0.0
    %1144 = vmatprep.subr.mxu0 0.0
    %1145 = vmatpush2.msra.mxu0 0.0
    %1146 = vmatprep.subr.mxu0 0.0
    %1147 = vmatpush2.msra.mxu0 0.0
    %1148 = vmatprep.subr.mxu0 0.0
    %1149 = vmatpush2.msra.mxu0 0.0
    %1150 = vmatprep.subr.mxu0 0.0
    %1151 = vmatpush2.msra.mxu0 0.0
    %1152 = vmatprep.subr.mxu0 0.0
    %1153 = vmatpush2.msra.mxu0 0.0
    %1154 = vmatprep.subr.mxu0 0.0
    %1155 = vmatpush2.msra.mxu0 0.0
    %1156 = vmatprep.subr.mxu0 0.0
    %1157 = vmatpush2.msra.mxu0 0.0
    %1158 = vmatprep.subr.mxu0 0.0
    %1159 = vmatpush2.msra.mxu0 0.0
    %1160 = vmatprep.subr.mxu0 0.0
    %1161 = vmatpush2.msra.mxu0 0.0
    %1162 = vmatprep.mubr.f32.mxu0 0.0
    %1163 = vmatmul.mubr.f32.gmra.mxu0 %v918
    %v1164 = vpop.f32.mrf.mxu0
    %v1165 = vadd.f32 %v1097, %v1164
    %v1166 = vpop.f32.mrf.mxu0
    %1167 = vdwg.mxu0
    %1168 = vst [vmem:[#allocation9] sm:$0x3] %v1165
    // Predicated region
    $region26: #{tpu_custom_call.1} parent=1 // pred_check
      _
    $region27: #{tpu_custom_call.1} parent=1 // pred_check_branch
      %1170 = sbr.rel (0) target = $region29
    $region28: #{tpu_custom_call.1} parent=1 // pred_region
      %s1172 = ssub.s32 256, 256
      %1173 = vsyncadd [#allocation4], %s1172
      %s1174 = sshll.u32 [#allocation8], 4
      %s1175 = int_to_ptr.vmem [resolvable:$true] %s1174
      %1180 = dma.vmem_to_hbm [thread:$0]  %s1175, 256, %s3, [#allocation4], 128, 128, 8
    $region29: #{tpu_custom_call.1} parent=1 // pred_fallthru
      _
    // Predicated region
    $region30: #{tpu_custom_call.1} parent=1 // pred_check
      _
    $region31: #{tpu_custom_call.1} parent=1 // pred_check_branch
      %1182 = sbr.rel (0) target = $region33
    $region32: #{tpu_custom_call.1} parent=1 // pred_region
      %s1184 = ssub.s32 32, 32
      %1185 = vsyncadd [#allocation10], %s1184
      %s1187 = sshll.u32 [#allocation9], 4
      %s1188 = int_to_ptr.vmem [resolvable:$true] %s1187
      %1190 = dma.vmem_to_hbm [thread:$0]  %s1188, 32, %s4, [#allocation10]
    $region33: #{tpu_custom_call.1} parent=1 // pred_fallthru
      _
    // Predicated region
    $region34: #{tpu_custom_call.1} parent=1 // pred_check
      _
    $region35: #{tpu_custom_call.1} parent=1 // pred_check_branch
      %1192 = sbr.rel (0) target = $region37
    $region36: #{tpu_custom_call.1} parent=1 // pred_region
      %1193 = dma.done [#allocation4], 256
    $region37: #{tpu_custom_call.1} parent=1 // pred_fallthru
      _
    // Predicated region
    $region38: #{tpu_custom_call.1} parent=1 // pred_check
      _
    $region39: #{tpu_custom_call.1} parent=1 // pred_check_branch
      %1195 = sbr.rel (0) target = $region41
    $region40: #{tpu_custom_call.1} parent=1 // pred_region
      %1196 = dma.done [#allocation10], 32
    $region41: #{tpu_custom_call.1} parent=1 // pred_fallthru
      _
    %1197 = vsyncpa [#allocation3], 1
    %1198 = vsyncpa [#allocation6], 1
    %1199 = vsyncpa [#allocation4], 1
    %1200 = vsyncpa [#allocation10], 1

</llo_original>
